<compile_context>
chip_gen: v6e
topology: v6e:2x2x1
jax: 0.10.0
libtpu: 0.0.40
codegen_flags: <defaults>
</compile_context>

<pallas_src>
import functools
import numpy as np

import jax
import jax.numpy as jnp
from jax import lax
from jax.experimental import pallas as pl
from jax.experimental.pallas import tpu as pltpu


# --------------------------------------------------------------------------
# Pallas kernel
# --------------------------------------------------------------------------

def _tca_kernel(q_ref, kp_ref, kn_ref, w1_ref, w2_ref, o_ref, *, inv_sqrt_d):
    """Fused TemporalCrossAttention for one (query-tile, n, t) grid step.

    q_ref : (1, 1, H, QT, D)  f32  queries of frame t (head-major, CLS row incl.)
    kp_ref: (1, 1, H, Q,  D)  f32  keys of frame max(t-1, 0)   (CLS stripped)
    kn_ref: (1, 1, H, Q,  D)  f32  keys of frame min(t+1, T-1) (CLS stripped)
    w1/w2 : (QT, Q, C)        bf16 unrolled relative-position weights; the row
                              that corresponds to the CLS query is all-zero.
    o_ref : (1, 1, QT, C)     f32
    """
    t = pl.program_id(2)
    num_t = pl.num_programs(2)

    q = q_ref[0, 0] * inv_sqrt_d                                   # (H, QT, D)

    def half(k_ref, w_ref):
        k = k_ref[0, 0]                                            # (H, Q, D)
        # All heads in one leading-batch MXU contraction.
        s = jnp.einsum('hld,hkd->hlk', q, k,
                       preferred_element_type=jnp.float32)         # (H, QT, Q)
        s = s - jnp.max(s, axis=-1, keepdims=True)
        e = jnp.exp(s)
        denom = jnp.sum(e, axis=-1, keepdims=True)
        p = e * pl.reciprocal(denom)        # exact (parity with reference softmax)
        attn = jnp.mean(p, axis=0)                                 # (QT, Q)
        # 'lk,lkc->lc' as a VPU multiply-reduce (bf16 w upcast on the fly,
        # f32 accumulation).  Avoids the 8x-padded M=1 batched matvec on the
        # MXU and keeps the vextended slot free for QK^T.
        return jnp.sum(attn[:, :, None] * w_ref[...], axis=1)      # (QT, C) f32

    # Zero-init once; only the temporally valid halves are computed/accumulated.
    o_ref[...] = jnp.zeros_like(o_ref)

    @pl.when(t >= 1)                 # uses k[t-1] / w1
    def _():
        o_ref[0, 0] += half(kp_ref, w1_ref)

    @pl.when(t < num_t - 1)          # uses k[t+1] / w2
    def _():
        o_ref[0, 0] += half(kn_ref, w2_ref)


# --------------------------------------------------------------------------
# Wrapper: VMEM-budget-aware tiling + one pallas_call
# --------------------------------------------------------------------------

def _vmem_capacity_bytes():
    """Physical VMEM per core (v5e/v6e: 128 MiB, v7x: 64 MiB); conservative fallback."""
    cap = 64 * 1024 * 1024
    try:
        cap = int(pltpu.get_tpu_info().vmem_capacity_bytes)
    except Exception:
        pass
    return cap


def _pick_q_tile(L, Q, C, H, D, w_itemsize, budget_bytes):
    """Largest query tile whose double-buffered blocks fit the VMEM budget."""
    def footprint(qt):
        q_b = 2 * H * qt * D * 4                  # q block, double-buffered
        k_b = 2 * 2 * H * Q * D * 4               # two neighbour-key blocks
        w_b = 2 * 2 * qt * Q * C * w_itemsize     # two tables (2 pipeline bufs each)
        o_b = 2 * qt * C * 4                      # output block
        tmp = qt * Q * C * 4                      # headroom: f32 multiply-reduce temp
        return q_b + k_b + w_b + o_b + tmp

    if footprint(L) <= budget_bytes:
        return L                                  # single tile (toy / small shapes)
    qt = max((L // 8) * 8, 8)
    while qt > 8 and footprint(qt) > budget_bytes:
        qt -= 8
    return max(qt, 8)


def temporal_cross_attention(q, k, w1, w2, idx, *, q_tile=None):
    """TemporalCrossAttention.forward:  q, k (N,T,L,H,D) -> (N,T,L,C)."""
    N, T, L, H, D = q.shape
    Q = L - 1
    C = w1.shape[-1]

    vmem_cap = _vmem_capacity_bytes()
    vmem_limit = min(int(vmem_cap * 0.9), 100 * 1024 * 1024)
    if q_tile is None:
        q_tile = _pick_q_tile(L, Q, C, H, D, 2, int(vmem_limit * 0.65))
    # (8, 128) rule: q_tile sits second-to-last in the q/out blocks, so it must
    # be a multiple of 8 or the full query length.  Ragged last tiles (q_tile
    # not dividing L) are handled by Pallas via masked edge stores.
    assert q_tile == L or q_tile % 8 == 0, q_tile
    n_qt = int(pl.cdiv(L, q_tile))

    # One head-major relayout in XLA (shared by both halves and every grid step).
    q_t = jnp.transpose(q, (0, 1, 3, 2, 4))              # (N, T, H, L, D)
    k_t = jnp.transpose(k[:, :, 1:], (0, 1, 3, 2, 4))    # (N, T, H, Q, D)

    # Unrolled relative-position tables, padded with a zero row for the CLS
    # query (dense lane-aligned stores; CLS output row is exactly zero) and
    # cast to bf16: w[idx] is the dominant byte stream, accumulation stays f32.
    def pad_unroll(w):
        wu = w[idx]                                       # (Q, Q, C)
        wu = jnp.concatenate([jnp.zeros((1, Q, C), w.dtype), wu], axis=0)
        return wu.astype(jnp.bfloat16)                    # (L, Q, C)

    w1_p = pad_unroll(w1)
    w2_p = pad_unroll(w2)

    kernel = functools.partial(_tca_kernel, inv_sqrt_d=float(1.0 / np.sqrt(D)))

    return pl.pallas_call(
        kernel,
        out_shape=jax.ShapeDtypeStruct((N, T, L, C), jnp.float32),
        # Query tile OUTERMOST: the w block index (lt, 0, 0) is constant across
        # the inner N*T steps, so the big w tiles are DMA'd once per tile and
        # reused (revisit skip) instead of re-fetched every step.
        grid=(n_qt, N, T),
        in_specs=[
            pl.BlockSpec((1, 1, H, q_tile, D),
                         lambda lt, n, t: (n, t, 0, lt, 0)),
            pl.BlockSpec((1, 1, H, Q, D),
                         lambda lt, n, t: (n, jnp.maximum(t - 1, 0), 0, 0, 0)),
            pl.BlockSpec((1, 1, H, Q, D),
                         lambda lt, n, t: (n, jnp.minimum(t + 1, T - 1), 0, 0, 0)),
            pl.BlockSpec((q_tile, Q, C), lambda lt, n, t: (lt, 0, 0)),
            pl.BlockSpec((q_tile, Q, C), lambda lt, n, t: (lt, 0, 0)),
        ],
        out_specs=pl.BlockSpec((1, 1, q_tile, C),
                               lambda lt, n, t: (n, t, lt, 0)),
        compiler_params=pltpu.CompilerParams(
            # Shard the even, independent axes (lt / N) across v7x's two
            # TensorCores; keep T sequential (boundary-frame imbalance).
            dimension_semantics=("parallel", "parallel", "arbitrary"),
            vmem_limit_bytes=int(vmem_limit)),
    )(q_t, k_t, k_t, w1_p, w2_p)


# --------------------------------------------------------------------------
# Helpers: idx_tensor construction + pure-JAX reference
# --------------------------------------------------------------------------

def build_idx_tensor(spatial_size):
    si, sj = spatial_size
    Q = si * sj
    idx = np.zeros((Q, Q), dtype=np.int32)
    for qq in range(Q):
        qi, qj = qq // sj, qq % sj
        for kk in range(Q):
            ki, kj = kk // sj, kk % sj
            i_offs = qi - ki + si - 1
            j_offs = qj - kj + sj - 1
            idx[qq, kk] = i_offs * (sj * 2 - 1) + j_offs
    return idx


def reference_tca(q, k, w1, w2, idx):
    """Direct transcription of the PyTorch forward (f32 precision)."""
    N, T, L, H, D = q.shape
    C = w1.shape[-1]
    hp = lax.Precision.HIGHEST

    def forward_half(qh, kh, w):
        qh, kh = qh[:, :, 1:], kh[:, :, 1:]
        attn = jnp.einsum('ntqhd,ntkhd->ntqkh', qh / np.sqrt(D), kh,
                          precision=hp)
        attn = jax.nn.softmax(attn, axis=-2).mean(axis=-1)
        return jnp.einsum('ntqk,qkc->ntqc', attn, w[idx], precision=hp)

    ret = jnp.zeros((N, T, L, C), jnp.float32)
    ret = ret.at[:, 1:, 1:, :].add(forward_half(q[:, 1:], k[:, :-1], w1))
    ret = ret.at[:, :-1, 1:, :].add(forward_half(q[:, :-1], k[:, 1:], w2))
    return ret


# --------------------------------------------------------------------------
# Main
# --------------------------------------------------------------------------

if __name__ == "__main__":
    N, T = 2, 4                     # batch, frames
    spatial = (4, 4)                # backbone spatial grid
    Q = spatial[0] * spatial[1]
    L = Q + 1                       # CLS + patches
    H, D = 4, 32                    # attention heads, head dim
    C = 128                         # feature_dim (multiple of 128 -> dense stores)
    w_size = (2 * spatial[0] - 1) * (2 * spatial[1] - 1)

    key = jax.random.PRNGKey(0)
    kq, kk, kw1, kw2 = jax.random.split(key, 4)
    q = jax.random.normal(kq, (N, T, L, H, D), jnp.float32)
    k = jax.random.normal(kk, (N, T, L, H, D), jnp.float32)
    # nn.Parameter is zero-init in the reference; random values exercise the math.
    w1 = jax.random.normal(kw1, (w_size, C), jnp.float32) * 0.02
    w2 = jax.random.normal(kw2, (w_size, C), jnp.float32) * 0.02
    idx = jnp.asarray(build_idx_tensor(spatial))

    fwd = jax.jit(temporal_cross_attention)
    out = fwd(q, k, w1, w2, idx)
    out = jax.block_until_ready(out)

    assert out.shape == (N, T, L, C), out.shape
    assert bool(jnp.all(jnp.isfinite(out)))

    ref = reference_tca(q, k, w1, w2, idx)
    max_err = float(jnp.max(jnp.abs(out - ref)))
    assert max_err < 2e-3, f"max abs err vs reference: {max_err}"

    print("KERNEL_OK")
</pallas_src>

<mosaic_0001>
module attributes {stable_mosaic.version = 11 : i64} {
  func.func @_tca_kernel(%arg0: i32, %arg1: i32, %arg2: i32, %arg3: memref<1x1x4x17x32xf32, #tpu.memory_space<vmem>>, %arg4: memref<1x1x4x16x32xf32, #tpu.memory_space<vmem>>, %arg5: memref<1x1x4x16x32xf32, #tpu.memory_space<vmem>>, %arg6: memref<17x16x128xbf16, #tpu.memory_space<vmem>>, %arg7: memref<17x16x128xbf16, #tpu.memory_space<vmem>>, %arg8: memref<1x1x17x128xf32, #tpu.memory_space<vmem>>) attributes {dimension_semantics = [#tpu.dimension_semantics<parallel>, #tpu.dimension_semantics<parallel>, #tpu.dimension_semantics<arbitrary>], iteration_bounds = array<i64: 1, 2, 4>, scalar_prefetch = 0 : i64, scratch_operands = 0 : i64, tpu.core_type = #tpu.core_type<tc>, window_params = [{transform_indices = @transform_0, window_bounds = array<i64: 1, 1, 4, 17, 32>}, {transform_indices = @transform_1, window_bounds = array<i64: 1, 1, 4, 16, 32>}, {transform_indices = @transform_2, window_bounds = array<i64: 1, 1, 4, 16, 32>}, {transform_indices = @transform_3, window_bounds = array<i64: 17, 16, 128>}, {transform_indices = @transform_4, window_bounds = array<i64: 17, 16, 128>}, {transform_indices = @transform_5, window_bounds = array<i64: 1, 1, 17, 128>}]} {
    %c0 = arith.constant 0 : index
    %c0_0 = arith.constant 0 : index
    %c0_1 = arith.constant 0 : index
    %c0_2 = arith.constant 0 : index
    %c0_3 = arith.constant 0 : index
    %0 = vector.load %arg3[%c0, %c0_0, %c0_1, %c0_2, %c0_3] : memref<1x1x4x17x32xf32, #tpu.memory_space<vmem>>, vector<1x1x4x17x32xf32>
    %1 = vector.shape_cast %0 : vector<1x1x4x17x32xf32> to vector<4x17x32xf32>
    %cst = arith.constant 0.176776692 : f32
    %2 = vector.broadcast %cst : f32 to vector<4x17x32xf32>
    %3 = arith.mulf %1, %2 : vector<4x17x32xf32>
    %cst_4 = arith.constant 0.000000e+00 : f32
    %4 = vector.broadcast %cst_4 : f32 to vector<1x1x17x128xf32>
    %c0_5 = arith.constant 0 : index
    %c0_6 = arith.constant 0 : index
    %c0_7 = arith.constant 0 : index
    %c0_8 = arith.constant 0 : index
    %5 = vector.load %arg8[%c0_5, %c0_6, %c0_7, %c0_8] : memref<1x1x17x128xf32, #tpu.memory_space<vmem>>, vector<1x1x17x128xf32>
    tpu.vector_store %arg8[%c0_5, %c0_6, %c0_7, %c0_8], %4 {strides = array<i32>} : memref<1x1x17x128xf32, #tpu.memory_space<vmem>>, vector<1x1x17x128xf32>,
    %c1_i32 = arith.constant 1 : i32
    %6 = arith.cmpi sge, %arg2, %c1_i32 : i32
    %7 = arith.extui %6 : i1 to i32
    %c0_i32 = arith.constant 0 : i32
    %8 = arith.cmpi ne, %7, %c0_i32 : i32
    scf.if %8 {
      %c0_10 = arith.constant 0 : index
      %c0_11 = arith.constant 0 : index
      %c0_12 = arith.constant 0 : index
      %c0_13 = arith.constant 0 : index
      %12 = vector.load %arg8[%c0_10, %c0_11, %c0_12, %c0_13] : memref<1x1x17x128xf32, #tpu.memory_space<vmem>>, vector<1x1x17x128xf32>
      %13 = vector.shape_cast %12 : vector<1x1x17x128xf32> to vector<17x128xf32>
      %c0_14 = arith.constant 0 : index
      %c0_15 = arith.constant 0 : index
      %c0_16 = arith.constant 0 : index
      %c0_17 = arith.constant 0 : index
      %c0_18 = arith.constant 0 : index
      %14 = vector.load %arg4[%c0_14, %c0_15, %c0_16, %c0_17, %c0_18] : memref<1x1x4x16x32xf32, #tpu.memory_space<vmem>>, vector<1x1x4x16x32xf32>
      %15 = vector.shape_cast %14 : vector<1x1x4x16x32xf32> to vector<4x16x32xf32>
      "tpu.trace_start"() <{level = 10 : i32, message = "hld,hkd->hlk"}> : () -> ()
      %cst_19 = arith.constant dense<0.000000e+00> : vector<4x17x16xf32>
      %16 = tpu.matmul %3, %15, %cst_19 {dimension_numbers = #tpu.dot_dimension_numbers<[2], [2], [1], [1], [0, 0, 0, 1, 1, 1], [0], [0]>} : vector<4x17x32xf32>, vector<4x16x32xf32>, vector<4x17x16xf32> -> vector<4x17x16xf32>
      "tpu.trace_stop"() : () -> ()
      %cst_20 = arith.constant dense<0xFF800000> : vector<4x17xf32>
      %17 = vector.multi_reduction <maximumf>, %16, %cst_20 [2] : vector<4x17x16xf32> to vector<4x17xf32>
      %18 = vector.shape_cast %17 : vector<4x17xf32> to vector<4x17x1xf32>
      %19 = vector.broadcast %18 : vector<4x17x1xf32> to vector<4x17x16xf32>
      %20 = arith.subf %16, %19 : vector<4x17x16xf32>
      %21 = math.exp %20 : vector<4x17x16xf32>
      %cst_21 = arith.constant dense<0.000000e+00> : vector<4x17xf32>
      %22 = vector.multi_reduction <add>, %21, %cst_21 [2] : vector<4x17x16xf32> to vector<4x17xf32>
      %23 = vector.shape_cast %22 : vector<4x17xf32> to vector<4x17x1xf32>
      %24 = tpu.reciprocal %23 : vector<4x17x1xf32> -> vector<4x17x1xf32>
      %25 = vector.broadcast %24 : vector<4x17x1xf32> to vector<4x17x16xf32>
      %26 = arith.mulf %21, %25 : vector<4x17x16xf32>
      %cst_22 = arith.constant dense<0.000000e+00> : vector<17x16xf32>
      %27 = vector.multi_reduction <add>, %26, %cst_22 [0] : vector<4x17x16xf32> to vector<17x16xf32>
      %cst_23 = arith.constant 4.000000e+00 : f32
      %28 = vector.broadcast %cst_23 : f32 to vector<17x16xf32>
      %29 = arith.divf %27, %28 : vector<17x16xf32>
      %30 = vector.shape_cast %29 : vector<17x16xf32> to vector<17x16x1xf32>
      %c0_24 = arith.constant 0 : index
      %c0_25 = arith.constant 0 : index
      %c0_26 = arith.constant 0 : index
      %31 = vector.load %arg6[%c0_24, %c0_25, %c0_26] : memref<17x16x128xbf16, #tpu.memory_space<vmem>>, vector<17x16x128xbf16>
      %32 = arith.extf %31 : vector<17x16x128xbf16> to vector<17x16x128xf32>
      %33 = vector.broadcast %30 : vector<17x16x1xf32> to vector<17x16x128xf32>
      %34 = arith.mulf %33, %32 : vector<17x16x128xf32>
      %cst_27 = arith.constant dense<0.000000e+00> : vector<17x128xf32>
      %35 = vector.multi_reduction <add>, %34, %cst_27 [1] : vector<17x16x128xf32> to vector<17x128xf32>
      %36 = arith.addf %13, %35 : vector<17x128xf32>
      %c0_28 = arith.constant 0 : index
      %c0_29 = arith.constant 0 : index
      %c0_30 = arith.constant 0 : index
      %c0_31 = arith.constant 0 : index
      %37 = vector.load %arg8[%c0_28, %c0_29, %c0_30, %c0_31] : memref<1x1x17x128xf32, #tpu.memory_space<vmem>>, vector<1x1x17x128xf32>
      %38 = vector.shape_cast %37 : vector<1x1x17x128xf32> to vector<17x128xf32>
      %39 = vector.shape_cast %36 : vector<17x128xf32> to vector<1x1x17x128xf32>
      tpu.vector_store %arg8[%c0_28, %c0_29, %c0_30, %c0_31], %39 {strides = array<i32>} : memref<1x1x17x128xf32, #tpu.memory_space<vmem>>, vector<1x1x17x128xf32>,
    } else {
    }
    %c3_i32 = arith.constant 3 : i32
    %9 = arith.cmpi slt, %arg2, %c3_i32 : i32
    %10 = arith.extui %9 : i1 to i32
    %c0_i32_9 = arith.constant 0 : i32
    %11 = arith.cmpi ne, %10, %c0_i32_9 : i32
    scf.if %11 {
      %c0_10 = arith.constant 0 : index
      %c0_11 = arith.constant 0 : index
      %c0_12 = arith.constant 0 : index
      %c0_13 = arith.constant 0 : index
      %12 = vector.load %arg8[%c0_10, %c0_11, %c0_12, %c0_13] : memref<1x1x17x128xf32, #tpu.memory_space<vmem>>, vector<1x1x17x128xf32>
      %13 = vector.shape_cast %12 : vector<1x1x17x128xf32> to vector<17x128xf32>
      %c0_14 = arith.constant 0 : index
      %c0_15 = arith.constant 0 : index
      %c0_16 = arith.constant 0 : index
      %c0_17 = arith.constant 0 : index
      %c0_18 = arith.constant 0 : index
      %14 = vector.load %arg5[%c0_14, %c0_15, %c0_16, %c0_17, %c0_18] : memref<1x1x4x16x32xf32, #tpu.memory_space<vmem>>, vector<1x1x4x16x32xf32>
      %15 = vector.shape_cast %14 : vector<1x1x4x16x32xf32> to vector<4x16x32xf32>
      "tpu.trace_start"() <{level = 10 : i32, message = "hld,hkd->hlk"}> : () -> ()
      %cst_19 = arith.constant dense<0.000000e+00> : vector<4x17x16xf32>
      %16 = tpu.matmul %3, %15, %cst_19 {dimension_numbers = #tpu.dot_dimension_numbers<[2], [2], [1], [1], [0, 0, 0, 1, 1, 1], [0], [0]>} : vector<4x17x32xf32>, vector<4x16x32xf32>, vector<4x17x16xf32> -> vector<4x17x16xf32>
      "tpu.trace_stop"() : () -> ()
      %cst_20 = arith.constant dense<0xFF800000> : vector<4x17xf32>
      %17 = vector.multi_reduction <maximumf>, %16, %cst_20 [2] : vector<4x17x16xf32> to vector<4x17xf32>
      %18 = vector.shape_cast %17 : vector<4x17xf32> to vector<4x17x1xf32>
      %19 = vector.broadcast %18 : vector<4x17x1xf32> to vector<4x17x16xf32>
      %20 = arith.subf %16, %19 : vector<4x17x16xf32>
      %21 = math.exp %20 : vector<4x17x16xf32>
      %cst_21 = arith.constant dense<0.000000e+00> : vector<4x17xf32>
      %22 = vector.multi_reduction <add>, %21, %cst_21 [2] : vector<4x17x16xf32> to vector<4x17xf32>
      %23 = vector.shape_cast %22 : vector<4x17xf32> to vector<4x17x1xf32>
      %24 = tpu.reciprocal %23 : vector<4x17x1xf32> -> vector<4x17x1xf32>
      %25 = vector.broadcast %24 : vector<4x17x1xf32> to vector<4x17x16xf32>
      %26 = arith.mulf %21, %25 : vector<4x17x16xf32>
      %cst_22 = arith.constant dense<0.000000e+00> : vector<17x16xf32>
      %27 = vector.multi_reduction <add>, %26, %cst_22 [0] : vector<4x17x16xf32> to vector<17x16xf32>
      %cst_23 = arith.constant 4.000000e+00 : f32
      %28 = vector.broadcast %cst_23 : f32 to vector<17x16xf32>
      %29 = arith.divf %27, %28 : vector<17x16xf32>
      %30 = vector.shape_cast %29 : vector<17x16xf32> to vector<17x16x1xf32>
      %c0_24 = arith.constant 0 : index
      %c0_25 = arith.constant 0 : index
      %c0_26 = arith.constant 0 : index
      %31 = vector.load %arg7[%c0_24, %c0_25, %c0_26] : memref<17x16x128xbf16, #tpu.memory_space<vmem>>, vector<17x16x128xbf16>
      %32 = arith.extf %31 : vector<17x16x128xbf16> to vector<17x16x128xf32>
      %33 = vector.broadcast %30 : vector<17x16x1xf32> to vector<17x16x128xf32>
      %34 = arith.mulf %33, %32 : vector<17x16x128xf32>
      %cst_27 = arith.constant dense<0.000000e+00> : vector<17x128xf32>
      %35 = vector.multi_reduction <add>, %34, %cst_27 [1] : vector<17x16x128xf32> to vector<17x128xf32>
      %36 = arith.addf %13, %35 : vector<17x128xf32>
      %c0_28 = arith.constant 0 : index
      %c0_29 = arith.constant 0 : index
      %c0_30 = arith.constant 0 : index
      %c0_31 = arith.constant 0 : index
      %37 = vector.load %arg8[%c0_28, %c0_29, %c0_30, %c0_31] : memref<1x1x17x128xf32, #tpu.memory_space<vmem>>, vector<1x1x17x128xf32>
      %38 = vector.shape_cast %37 : vector<1x1x17x128xf32> to vector<17x128xf32>
      %39 = vector.shape_cast %36 : vector<17x128xf32> to vector<1x1x17x128xf32>
      tpu.vector_store %arg8[%c0_28, %c0_29, %c0_30, %c0_31], %39 {strides = array<i32>} : memref<1x1x17x128xf32, #tpu.memory_space<vmem>>, vector<1x1x17x128xf32>,
    } else {
    }
    return
  }
  func.func @transform_0(%arg0: i32, %arg1: i32, %arg2: i32) -> (i32, i32, i32, i32, i32) {
    %c0_i32 = arith.constant 0 : i32
    %c0_i32_0 = arith.constant 0 : i32
    %c0_i32_1 = arith.constant 0 : i32
    return %arg1, %arg2, %c0_i32, %arg0, %c0_i32_0 : i32, i32, i32, i32, i32
  }
  func.func @transform_1(%arg0: i32, %arg1: i32, %arg2: i32) -> (i32, i32, i32, i32, i32) {
    %c1_i32 = arith.constant 1 : i32
    %0 = arith.subi %arg2, %c1_i32 : i32
    %c0_i32 = arith.constant 0 : i32
    %1 = arith.maxsi %0, %c0_i32 : i32
    %c0_i32_0 = arith.constant 0 : i32
    %c0_i32_1 = arith.constant 0 : i32
    %c0_i32_2 = arith.constant 0 : i32
    %c0_i32_3 = arith.constant 0 : i32
    return %arg1, %1, %c0_i32_0, %c0_i32_1, %c0_i32_2 : i32, i32, i32, i32, i32
  }
  func.func @transform_2(%arg0: i32, %arg1: i32, %arg2: i32) -> (i32, i32, i32, i32, i32) {
    %c1_i32 = arith.constant 1 : i32
    %0 = arith.addi %arg2, %c1_i32 : i32
    %c3_i32 = arith.constant 3 : i32
    %1 = arith.minsi %0, %c3_i32 : i32
    %c0_i32 = arith.constant 0 : i32
    %c0_i32_0 = arith.constant 0 : i32
    %c0_i32_1 = arith.constant 0 : i32
    %c0_i32_2 = arith.constant 0 : i32
    return %arg1, %1, %c0_i32, %c0_i32_0, %c0_i32_1 : i32, i32, i32, i32, i32
  }
  func.func @transform_3(%arg0: i32, %arg1: i32, %arg2: i32) -> (i32, i32, i32) {
    %c0_i32 = arith.constant 0 : i32
    %c0_i32_0 = arith.constant 0 : i32
    %c0_i32_1 = arith.constant 0 : i32
    return %arg0, %c0_i32, %c0_i32_0 : i32, i32, i32
  }
  func.func @transform_4(%arg0: i32, %arg1: i32, %arg2: i32) -> (i32, i32, i32) {
    %c0_i32 = arith.constant 0 : i32
    %c0_i32_0 = arith.constant 0 : i32
    %c0_i32_1 = arith.constant 0 : i32
    return %arg0, %c0_i32, %c0_i32_0 : i32, i32, i32
  }
  func.func @transform_5(%arg0: i32, %arg1: i32, %arg2: i32) -> (i32, i32, i32, i32) {
    %c0_i32 = arith.constant 0 : i32
    %c0_i32_0 = arith.constant 0 : i32
    return %arg1, %arg2, %arg0, %c0_i32 : i32, i32, i32, i32
  }
}

</mosaic_0001>

<llo_original>
// kernel: temporal_cross_attention.1
$region0: #{temporal_cross_attention.1}
  #allocation0 [shape = 'u32[]', space=smem, size = 0x4, offset = 0x4, fixed_abs, tag = 'smem constant byte address 0x4 - core index']
  #allocation1 [shape = 'u32[144,128]{1,0:T(1,128)}', space=vmem, size = 0x12000, scoped, tag = 'internal scratch']
  %s0 = inlined_call_operand.vmem [shape: f32[2,4,4,17,32], index: 0, kind: input, shape index: {}]
  %s1 = inlined_call_operand.vmem [shape: f32[2,4,4,16,32], index: 1, kind: input, shape index: {}, may-alias: {1,2}]
  %s2 = inlined_call_operand.vmem [shape: f32[2,4,4,16,32], index: 2, kind: input, shape index: {}, may-alias: {1,2}]
  %s3 = inlined_call_operand.vmem [shape: bf16[17,16,128], index: 3, kind: input, shape index: {}]
  %s4 = inlined_call_operand.vmem [shape: bf16[17,16,128], index: 4, kind: input, shape index: {}]
  %s5 = inlined_call_operand.vmem [shape: f32[2,4,17,128], index: 5, kind: output, shape index: {}]
  %s6 = sld [smem:[#allocation0]]
  $region61: #{temporal_cross_attention.1} parent=0
    _
  %s8 = ssub.s32 1, %s6
  %s9 = scalar_select 0, %s8, %s6
  loop: start=0, step=1, limit=10
  $region2: #{temporal_cross_attention.1} parent=0 // loop_pre_header
    _
  $region3: #{temporal_cross_attention.1} parent=0 // loop_header
    %s11 = sphi 0, %s15
    %p12 = scmp.ge.s32.totalorder %s11, 10
    %s18 = sphi 0, %s37
    %s19 = sphi 0, %s33
    %s20 = sphi 0, %s29
    %s21 = sphi 0, %s18
    %s22 = sphi 0, %s19
    %s23 = sphi 0, %s20
    %s24 = sphi 0, %s21
    %s25 = sphi 0, %s22
    %s26 = sphi 0, %s23
    %s44 = sphi 0, %s46
    %s47 = sphi 0, %s44
    %s48 = sphi 0, %s47
    %s64 = sphi 0, %s48
    %s78 = sphi 0, %s80
    %s81 = sphi 0, %s78
    %s82 = sphi 0, %s81
    %s98 = sphi 0, %s82
    %s112 = sphi 0, %s114
    %s115 = sphi 0, %s112
    %s116 = sphi 0, %s115
    %s132 = sphi 0, %s116
    %s138 = sphi 0, %s140
    %s141 = sphi 0, %s138
    %s142 = sphi 0, %s141
    %s158 = sphi 0, %s142
    %s164 = sphi 0, %s166
    %s167 = sphi 0, %s164
    %s168 = sphi 0, %s167
    %s184 = sphi 0, %s168
    %s194 = sphi 0, %s196
    %s197 = sphi 0, %s194
    %s198 = sphi 0, %s197
    %s214 = sphi 0, %s198
  $region4: #{temporal_cross_attention.1} parent=0 // loop_header_branch
    %14 = sbr.rel (%p12) target = $region8
  $region5: #{temporal_cross_attention.1} parent=0 // loop_body
    %s16 = ssub.s32 %s11, 1
    %s17 = ssub.s32 %s11, 2
    %s27 = sadd.s32 1, %s20
    %p28 = scmp.ge.s32.totalorder %s27, 4
    %s29 = scalar_select %p28, 0, %s27
    %s30 = sadd.s32 1, %s19
    %s31 = scalar_select %p28, %s30, %s19
    %p32 = scmp.ge.s32.totalorder %s31, 2
    %s33 = scalar_select %p32, 0, %s31
    %s34 = sadd.s32 1, %s18
    %s35 = scalar_select %p32, %s34, %s18
    %p36 = scmp.ge.s32.totalorder %s35, 1
    %s37 = scalar_select %p36, 0, %s35
    %s38 = ssub.s32 %s19, %s33
    %s39 = ssub.s32 %s20, %s29
    %s40 = sor.u32 %s38, %s39
    %s41 = ssub.s32 %s18, %s37
    %s42 = sor.u32 %s40, %s41
    %p43 = scmp.eq.s32.totalorder %s42, 0
    %s45 = sadd.s32 %s44, 1
    %s46 = scalar_select %p43, %s44, %s45
    %p49 = pneg %p43
    %p50 = scmp.eq.s32.totalorder %s11, 7
    %p51 = por %p49, %p50
    %p52 = scmp.ne.s32.totalorder %s44, %s47
    %p53 = scmp.eq.s32.totalorder %s11, 0
    %p54 = por %p52, %p53
    %p55 = scmp.ne.s32.totalorder %s44, %s47
    %p56 = scmp.eq.s32.totalorder %s16, 7
    %p57 = por %p55, %p56
    %p58 = scmp.ne.s32.totalorder %s47, %s48
    %p59 = scmp.eq.s32.totalorder %s16, 0
    %p60 = por %p58, %p59
    %p61 = scmp.ne.s32.totalorder %s47, %s48
    %p62 = scmp.eq.s32.totalorder %s17, 7
    %p63 = por %p61, %p62
    %p65 = scmp.ne.s32.totalorder %s48, %s64
    %p66 = scmp.eq.s32.totalorder %s17, 0
    %p67 = por %p65, %p66
    %s68 = ssub.s32 %s20, 1
    %p69 = scmp.gt.s32.totalorder %s68, 0
    %s70 = scalar_select %p69, %s68, 0
    %s71 = ssub.s32 %s29, 1
    %p72 = scmp.gt.s32.totalorder %s71, 0
    %s73 = scalar_select %p72, %s71, 0
    %s74 = ssub.s32 %s19, %s33
    %s75 = ssub.s32 %s70, %s73
    %s76 = sor.u32 %s74, %s75
    %p77 = scmp.eq.s32.totalorder %s76, 0
    %s79 = sadd.s32 %s78, 1
    %s80 = scalar_select %p77, %s78, %s79
    %p83 = pneg %p77
    %p84 = scmp.eq.s32.totalorder %s11, 7
    %p85 = por %p83, %p84
    %p86 = scmp.ne.s32.totalorder %s78, %s81
    %p87 = scmp.eq.s32.totalorder %s11, 0
    %p88 = por %p86, %p87
    %p89 = scmp.ne.s32.totalorder %s78, %s81
    %p90 = scmp.eq.s32.totalorder %s16, 7
    %p91 = por %p89, %p90
    %p92 = scmp.ne.s32.totalorder %s81, %s82
    %p93 = scmp.eq.s32.totalorder %s16, 0
    %p94 = por %p92, %p93
    %p95 = scmp.ne.s32.totalorder %s81, %s82
    %p96 = scmp.eq.s32.totalorder %s17, 7
    %p97 = por %p95, %p96
    %p99 = scmp.ne.s32.totalorder %s82, %s98
    %p100 = scmp.eq.s32.totalorder %s17, 0
    %p101 = por %p99, %p100
    %s102 = sadd.s32 %s20, 1
    %p103 = scmp.lt.s32.totalorder %s102, 3
    %s104 = scalar_select %p103, %s102, 3
    %s105 = sadd.s32 %s29, 1
    %p106 = scmp.lt.s32.totalorder %s105, 3
    %s107 = scalar_select %p106, %s105, 3
    %s108 = ssub.s32 %s19, %s33
    %s109 = ssub.s32 %s104, %s107
    %s110 = sor.u32 %s108, %s109
    %p111 = scmp.eq.s32.totalorder %s110, 0
    %s113 = sadd.s32 %s112, 1
    %s114 = scalar_select %p111, %s112, %s113
    %p117 = pneg %p111
    %p118 = scmp.eq.s32.totalorder %s11, 7
    %p119 = por %p117, %p118
    %p120 = scmp.ne.s32.totalorder %s112, %s115
    %p121 = scmp.eq.s32.totalorder %s11, 0
    %p122 = por %p120, %p121
    %p123 = scmp.ne.s32.totalorder %s112, %s115
    %p124 = scmp.eq.s32.totalorder %s16, 7
    %p125 = por %p123, %p124
    %p126 = scmp.ne.s32.totalorder %s115, %s116
    %p127 = scmp.eq.s32.totalorder %s16, 0
    %p128 = por %p126, %p127
    %p129 = scmp.ne.s32.totalorder %s115, %s116
    %p130 = scmp.eq.s32.totalorder %s17, 7
    %p131 = por %p129, %p130
    %p133 = scmp.ne.s32.totalorder %s116, %s132
    %p134 = scmp.eq.s32.totalorder %s17, 0
    %p135 = por %p133, %p134
    %s136 = ssub.s32 %s18, %s37
    %p137 = scmp.eq.s32.totalorder %s136, 0
    %s139 = sadd.s32 %s138, 1
    %s140 = scalar_select %p137, %s138, %s139
    %p143 = pneg %p137
    %p144 = scmp.eq.s32.totalorder %s11, 7
    %p145 = por %p143, %p144
    %p146 = scmp.ne.s32.totalorder %s138, %s141
    %p147 = scmp.eq.s32.totalorder %s11, 0
    %p148 = por %p146, %p147
    %p149 = scmp.ne.s32.totalorder %s138, %s141
    %p150 = scmp.eq.s32.totalorder %s16, 7
    %p151 = por %p149, %p150
    %p152 = scmp.ne.s32.totalorder %s141, %s142
    %p153 = scmp.eq.s32.totalorder %s16, 0
    %p154 = por %p152, %p153
    %p155 = scmp.ne.s32.totalorder %s141, %s142
    %p156 = scmp.eq.s32.totalorder %s17, 7
    %p157 = por %p155, %p156
    %p159 = scmp.ne.s32.totalorder %s142, %s158
    %p160 = scmp.eq.s32.totalorder %s17, 0
    %p161 = por %p159, %p160
    %s162 = ssub.s32 %s18, %s37
    %p163 = scmp.eq.s32.totalorder %s162, 0
    %s165 = sadd.s32 %s164, 1
    %s166 = scalar_select %p163, %s164, %s165
    %p169 = pneg %p163
    %p170 = scmp.eq.s32.totalorder %s11, 7
    %p171 = por %p169, %p170
    %p172 = scmp.ne.s32.totalorder %s164, %s167
    %p173 = scmp.eq.s32.totalorder %s11, 0
    %p174 = por %p172, %p173
    %p175 = scmp.ne.s32.totalorder %s164, %s167
    %p176 = scmp.eq.s32.totalorder %s16, 7
    %p177 = por %p175, %p176
    %p178 = scmp.ne.s32.totalorder %s167, %s168
    %p179 = scmp.eq.s32.totalorder %s16, 0
    %p180 = por %p178, %p179
    %p181 = scmp.ne.s32.totalorder %s167, %s168
    %p182 = scmp.eq.s32.totalorder %s17, 7
    %p183 = por %p181, %p182
    %p185 = scmp.ne.s32.totalorder %s168, %s184
    %p186 = scmp.eq.s32.totalorder %s17, 0
    %p187 = por %p185, %p186
    %s188 = ssub.s32 %s19, %s33
    %s189 = ssub.s32 %s20, %s29
    %s190 = sor.u32 %s188, %s189
    %s191 = ssub.s32 %s18, %s37
    %s192 = sor.u32 %s190, %s191
    %p193 = scmp.eq.s32.totalorder %s192, 0
    %s195 = sadd.s32 %s194, 1
    %s196 = scalar_select %p193, %s194, %s195
    %p199 = pneg %p193
    %p200 = scmp.eq.s32.totalorder %s11, 7
    %p201 = por %p199, %p200
    %p202 = scmp.ne.s32.totalorder %s194, %s197
    %p203 = scmp.eq.s32.totalorder %s11, 0
    %p204 = por %p202, %p203
    %p205 = scmp.ne.s32.totalorder %s194, %s197
    %p206 = scmp.eq.s32.totalorder %s16, 7
    %p207 = por %p205, %p206
    %p208 = scmp.ne.s32.totalorder %s197, %s198
    %p209 = scmp.eq.s32.totalorder %s16, 0
    %p210 = por %p208, %p209
    %p211 = scmp.ne.s32.totalorder %s197, %s198
    %p212 = scmp.eq.s32.totalorder %s17, 7
    %p213 = por %p211, %p212
    %p215 = scmp.ne.s32.totalorder %s198, %s214
    %p216 = scmp.eq.s32.totalorder %s17, 0
    %p217 = por %p215, %p216
    %p218 = scmp.le.s32.totalorder 1, %s11
    %p219 = scmp.lt.s32.totalorder %s11, 9
    %p220 = pnand %p218, %p219
    %p221 = pneg %p220
    // Predicated region
    $region9: #{temporal_cross_attention.1} parent=5 // pred_check
      _
    $region10: #{temporal_cross_attention.1} parent=5 // pred_check_branch
      %223 = sbr.rel (%p220) target = $region12
    $region11: #{temporal_cross_attention.1} parent=5 // pred_region
      %s224 = ssub.s32 %s11, 1
      // Predicated region
      $region13: #{temporal_cross_attention.1} parent=11 // pred_check
        %p225 = pneg %p154
      $region14: #{temporal_cross_attention.1} parent=11 // pred_check_branch
        %227 = sbr.rel (%p225) target = $region16
      $region15: #{temporal_cross_attention.1} parent=11 // pred_region
        %s228 = smul.u32 17, %s21
        %p229 = scmp.lt.s32.totalorder %s228, 16
        %s230 = scalar_select %p229, %s228, 16
        %s231 = smul.addr %s230, 2
        %s232 = smul.addr %s231, 4
        %s233 = scalar_lea.vmem %s3, %s232
        %s234 = smul.u32 17, %s21
      $region16: #{temporal_cross_attention.1} parent=11 // pred_fallthru
        _
      // Predicated region
      $region17: #{temporal_cross_attention.1} parent=11 // pred_check
        %p235 = pneg %p180
      $region18: #{temporal_cross_attention.1} parent=11 // pred_check_branch
        %237 = sbr.rel (%p235) target = $region20
      $region19: #{temporal_cross_attention.1} parent=11 // pred_region
        %s238 = smul.u32 17, %s21
        %p239 = scmp.lt.s32.totalorder %s238, 16
        %s240 = scalar_select %p239, %s238, 16
        %s241 = smul.addr %s240, 2
        %s242 = smul.addr %s241, 4
        %s243 = scalar_lea.vmem %s4, %s242
        %s244 = smul.u32 17, %s21
      $region20: #{temporal_cross_attention.1} parent=11 // pred_fallthru
        _
    $region12: #{temporal_cross_attention.1} parent=5 // pred_fallthru
      _
    %p245 = scmp.lt.s32.totalorder %s11, 8
    // Predicated region
    $region21: #{temporal_cross_attention.1} parent=5 // pred_check
      %p246 = pneg %p245
    $region22: #{temporal_cross_attention.1} parent=5 // pred_check_branch
      %248 = sbr.rel (%p246) target = $region24
    $region23: #{temporal_cross_attention.1} parent=5 // pred_region
      // Predicated region
      $region25: #{temporal_cross_attention.1} parent=23 // pred_check
        %p249 = pneg %p54
      $region26: #{temporal_cross_attention.1} parent=23 // pred_check_branch
        %251 = sbr.rel (%p249) target = $region28
      $region27: #{temporal_cross_attention.1} parent=23 // pred_region
        %s252 = smul.u32 3, %s18
        %p253 = scmp.lt.s32.totalorder %s19, 1
        %s254 = scalar_select %p253, %s19, 1
        %p255 = scmp.lt.s32.totalorder %s20, 3
        %s256 = scalar_select %p255, %s20, 3
        %p257 = scmp.lt.s32.totalorder %s252, 2
        %s258 = scalar_select %p257, %s252, 2
        %s259 = smul.addr %s256, 12
        %s260 = sadd.s32 %s258, %s259
        %s261 = smul.addr %s254, 48
        %s262 = sadd.s32 %s260, %s261
        %s263 = smul.addr %s262, 8
        %s264 = scalar_lea.vmem %s0, %s263
        %s265 = smul.u32 3, %s18
      $region28: #{temporal_cross_attention.1} parent=23 // pred_fallthru
        _
      // Predicated region
      $region29: #{temporal_cross_attention.1} parent=23 // pred_check
        %p266 = pneg %p88
      $region30: #{temporal_cross_attention.1} parent=23 // pred_check_branch
        %268 = sbr.rel (%p266) target = $region32
      $region31: #{temporal_cross_attention.1} parent=23 // pred_region
        %s269 = ssub.s32 %s20, 1
        %p270 = scmp.gt.s32.totalorder %s269, 0
        %s271 = scalar_select %p270, %s269, 0
        %p272 = scmp.lt.s32.totalorder %s19, 1
        %s273 = scalar_select %p272, %s19, 1
        %p274 = scmp.lt.s32.totalorder %s271, 3
        %s275 = scalar_select %p274, %s271, 3
        %s276 = smul.addr %s275, 8
        %s277 = smul.addr %s273, 32
        %s278 = sadd.s32 %s276, %s277
        %s279 = smul.addr %s278, 8
        %s280 = scalar_lea.vmem %s1, %s279
        %s281 = ssub.s32 %s20, 1
        %p282 = scmp.gt.s32.totalorder %s281, 0
        %s283 = scalar_select %p282, %s281, 0
      $region32: #{temporal_cross_attention.1} parent=23 // pred_fallthru
        _
      // Predicated region
      $region33: #{temporal_cross_attention.1} parent=23 // pred_check
        %p284 = pneg %p122
      $region34: #{temporal_cross_attention.1} parent=23 // pred_check_branch
        %286 = sbr.rel (%p284) target = $region36
      $region35: #{temporal_cross_attention.1} parent=23 // pred_region
        %s287 = sadd.s32 %s20, 1
        %p288 = scmp.lt.s32.totalorder %s287, 3
        %s289 = scalar_select %p288, %s287, 3
        %p290 = scmp.lt.s32.totalorder %s19, 1
        %s291 = scalar_select %p290, %s19, 1
        %p292 = scmp.lt.s32.totalorder %s289, 3
        %s293 = scalar_select %p292, %s289, 3
        %s294 = smul.addr %s293, 8
        %s295 = smul.addr %s291, 32
        %s296 = sadd.s32 %s294, %s295
        %s297 = smul.addr %s296, 8
        %s298 = scalar_lea.vmem %s2, %s297
        %s299 = sadd.s32 %s20, 1
        %p300 = scmp.lt.s32.totalorder %s299, 3
        %s301 = scalar_select %p300, %s299, 3
      $region36: #{temporal_cross_attention.1} parent=23 // pred_fallthru
        _
    $region24: #{temporal_cross_attention.1} parent=5 // pred_fallthru
      _
    %p302 = scmp.le.s32.totalorder 1, %s11
    %p303 = scmp.lt.s32.totalorder %s11, 9
    %p304 = pnand %p302, %p303
    %p305 = pneg %p304
    // Predicated region
    $region37: #{temporal_cross_attention.1} parent=5 // pred_check
      _
    $region38: #{temporal_cross_attention.1} parent=5 // pred_check_branch
      %307 = sbr.rel (%p304) target = $region40
    $region39: #{temporal_cross_attention.1} parent=5 // pred_region
      %s308 = ssub.s32 %s11, 1
      %s309 = smul.u32 3, %s21
      %p310 = scmp.lt.s32.totalorder %s22, 1
      %s311 = scalar_select %p310, %s22, 1
      %p312 = scmp.lt.s32.totalorder %s23, 3
      %s313 = scalar_select %p312, %s23, 3
      %p314 = scmp.lt.s32.totalorder %s309, 2
      %s315 = scalar_select %p314, %s309, 2
      %s316 = smul.addr %s313, 12
      %s317 = sadd.s32 %s315, %s316
      %s318 = smul.addr %s311, 48
      %s319 = sadd.s32 %s317, %s318
      %s320 = smul.addr %s319, 8
      %s321 = scalar_lea.vmem %s0, %s320
      %p322 = pneg %p60
      %p323 = pneg %p57
      %s324 = ssub.s32 %s23, 1
      %p325 = scmp.gt.s32.totalorder %s324, 0
      %s326 = scalar_select %p325, %s324, 0
      %p327 = scmp.lt.s32.totalorder %s22, 1
      %s328 = scalar_select %p327, %s22, 1
      %p329 = scmp.lt.s32.totalorder %s326, 3
      %s330 = scalar_select %p329, %s326, 3
      %s331 = smul.addr %s330, 8
      %s332 = smul.addr %s328, 32
      %s333 = sadd.s32 %s331, %s332
      %s334 = smul.addr %s333, 8
      %s335 = scalar_lea.vmem %s1, %s334
      %p336 = pneg %p94
      %p337 = pneg %p91
      %s338 = sadd.s32 %s23, 1
      %p339 = scmp.lt.s32.totalorder %s338, 3
      %s340 = scalar_select %p339, %s338, 3
      %p341 = scmp.lt.s32.totalorder %s22, 1
      %s342 = scalar_select %p341, %s22, 1
      %p343 = scmp.lt.s32.totalorder %s340, 3
      %s344 = scalar_select %p343, %s340, 3
      %s345 = smul.addr %s344, 8
      %s346 = smul.addr %s342, 32
      %s347 = sadd.s32 %s345, %s346
      %s348 = smul.addr %s347, 8
      %s349 = scalar_lea.vmem %s2, %s348
      %p350 = pneg %p128
      %p351 = pneg %p125
      %s352 = smul.u32 17, %s21
      %p353 = scmp.lt.s32.totalorder %s352, 16
      %s354 = scalar_select %p353, %s352, 16
      %s355 = smul.addr %s354, 2
      %s356 = smul.addr %s355, 4
      %s357 = scalar_lea.vmem %s3, %s356
      %p358 = pneg %p154
      %p359 = pneg %p151
      %s360 = smul.u32 17, %s21
      %p361 = scmp.lt.s32.totalorder %s360, 16
      %s362 = scalar_select %p361, %s360, 16
      %s363 = smul.addr %s362, 2
      %s364 = smul.addr %s363, 4
      %s365 = scalar_lea.vmem %s4, %s364
      %p366 = pneg %p180
      %p367 = pneg %p177
      %p368 = pneg %p210
      %p369 = pneg %p207
      %s370 = smul.u32 3, %s21
      %p371 = scmp.lt.s32.totalorder %s22, 1
      %s372 = scalar_select %p371, %s22, 1
      %p373 = scmp.lt.s32.totalorder %s23, 3
      %s374 = scalar_select %p373, %s23, 3
      %p375 = scmp.lt.s32.totalorder %s370, 2
      %s376 = scalar_select %p375, %s370, 2
      %s377 = smul.addr %s374, 3
      %s378 = sadd.s32 %s376, %s377
      %s379 = smul.addr %s372, 12
      %s380 = sadd.s32 %s378, %s379
      %s381 = smul.addr %s380, 8
      %s382 = scalar_lea.vmem %s5, %s381
      %s383 = smul.u32 3, %s21
      %p384 = scmp.lt.s32.totalorder %s22, 1
      %s385 = scalar_select %p384, %s22, 1
      %p386 = scmp.lt.s32.totalorder %s23, 3
      %s387 = scalar_select %p386, %s23, 3
      %p388 = scmp.lt.s32.totalorder %s383, 2
      %s389 = scalar_select %p388, %s383, 2
      %s390 = smul.addr %s387, 12
      %s391 = sadd.s32 %s389, %s390
      %s392 = smul.addr %s385, 48
      %s393 = sadd.s32 %s391, %s392
      %s394 = smul.addr %s393, 8
      %s395 = scalar_lea.vmem %s0, %s394
      %s396 = smul.u32 3, %s21
      %s397 = ssub.s32 %s23, 1
      %p398 = scmp.gt.s32.totalorder %s397, 0
      %s399 = scalar_select %p398, %s397, 0
      %p400 = scmp.lt.s32.totalorder %s22, 1
      %s401 = scalar_select %p400, %s22, 1
      %p402 = scmp.lt.s32.totalorder %s399, 3
      %s403 = scalar_select %p402, %s399, 3
      %s404 = smul.addr %s403, 8
      %s405 = smul.addr %s401, 32
      %s406 = sadd.s32 %s404, %s405
      %s407 = smul.addr %s406, 8
      %s408 = scalar_lea.vmem %s1, %s407
      %s409 = ssub.s32 %s23, 1
      %p410 = scmp.gt.s32.totalorder %s409, 0
      %s411 = scalar_select %p410, %s409, 0
      %s412 = sadd.s32 %s23, 1
      %p413 = scmp.lt.s32.totalorder %s412, 3
      %s414 = scalar_select %p413, %s412, 3
      %p415 = scmp.lt.s32.totalorder %s22, 1
      %s416 = scalar_select %p415, %s22, 1
      %p417 = scmp.lt.s32.totalorder %s414, 3
      %s418 = scalar_select %p417, %s414, 3
      %s419 = smul.addr %s418, 8
      %s420 = smul.addr %s416, 32
      %s421 = sadd.s32 %s419, %s420
      %s422 = smul.addr %s421, 8
      %s423 = scalar_lea.vmem %s2, %s422
      %s424 = sadd.s32 %s23, 1
      %p425 = scmp.lt.s32.totalorder %s424, 3
      %s426 = scalar_select %p425, %s424, 3
      %s427 = smul.u32 17, %s21
      %p428 = scmp.lt.s32.totalorder %s427, 16
      %s429 = scalar_select %p428, %s427, 16
      %s430 = smul.addr %s429, 2
      %s431 = smul.addr %s430, 4
      %s432 = scalar_lea.vmem %s3, %s431
      %s433 = smul.u32 17, %s21
      %s434 = smul.u32 17, %s21
      %p435 = scmp.lt.s32.totalorder %s434, 16
      %s436 = scalar_select %p435, %s434, 16
      %s437 = smul.addr %s436, 2
      %s438 = smul.addr %s437, 4
      %s439 = scalar_lea.vmem %s4, %s438
      %s440 = smul.u32 17, %s21
      %s441 = smul.u32 3, %s21
      %p442 = scmp.lt.s32.totalorder %s22, 1
      %s443 = scalar_select %p442, %s22, 1
      %p444 = scmp.lt.s32.totalorder %s23, 3
      %s445 = scalar_select %p444, %s23, 3
      %p446 = scmp.lt.s32.totalorder %s441, 2
      %s447 = scalar_select %p446, %s441, 2
      %s448 = smul.addr %s445, 3
      %s449 = sadd.s32 %s447, %s448
      %s450 = smul.addr %s443, 12
      %s451 = sadd.s32 %s449, %s450
      %s452 = smul.addr %s451, 8
      %s453 = scalar_lea.vmem %s5, %s452
      %s454 = smul.u32 3, %s21
      %v455 = vld [vmem:[%s395] sm:$0xff]
      %v456 = vld [vmem:[%s395 + $0x8] sm:$0xff]
      %v457 = vld [vmem:[%s395 + $0x10] sm:$0x1]
      %v458 = vld [vmem:[%s395 + $0x18] sm:$0xff]
      %v459 = vld [vmem:[%s395 + $0x20] sm:$0xff]
      %v460 = vld [vmem:[%s395 + $0x28] sm:$0x1]
      %v461 = vld [vmem:[%s395 + $0x30] sm:$0xff]
      %v462 = vld [vmem:[%s395 + $0x38] sm:$0xff]
      %v463 = vld [vmem:[%s395 + $0x40] sm:$0x1]
      %v464 = vld [vmem:[%s395 + $0x48] sm:$0xff]
      %v465 = vld [vmem:[%s395 + $0x50] sm:$0xff]
      %v466 = vld [vmem:[%s395 + $0x58] sm:$0x1]
      %v467 = vmul.f32 %v455, 0.17677669
      %v468 = vmul.f32 %v456, 0.17677669
      %v469 = vmul.f32 %v457, 0.17677669
      %v470 = vmul.f32 %v458, 0.17677669
      %v471 = vmul.f32 %v459, 0.17677669
      %v472 = vmul.f32 %v460, 0.17677669
      %v473 = vmul.f32 %v461, 0.17677669
      %v474 = vmul.f32 %v462, 0.17677669
      %v475 = vmul.f32 %v463, 0.17677669
      %v476 = vmul.f32 %v464, 0.17677669
      %v477 = vmul.f32 %v465, 0.17677669
      %v478 = vmul.f32 %v466, 0.17677669
      %479 = vst [vmem:[%s453] sm:$0xff] 0.0
      %480 = vst [vmem:[%s453 + $0x8] sm:$0xff] 0.0
      %481 = vst [vmem:[%s453 + $0x10] sm:$0x1] 0.0
      %p482 = scmp.ge.s32.totalorder %s23, 1
      // Predicated region
      $region41: #{temporal_cross_attention.1} parent=39 // pred_check
        %p483 = pneg %p482
      $region42: #{temporal_cross_attention.1} parent=39 // pred_check_branch
        %485 = sbr.rel (%p483) target = $region44
      $region43: #{temporal_cross_attention.1} parent=39 // pred_region
        %v486 = vld [vmem:[%s453] sm:$0xff]
        %v487 = vld [vmem:[%s453 + $0x8] sm:$0xff]
        %v488 = vld [vmem:[%s453 + $0x10] sm:$0x1]
        %v489 = vld [vmem:[%s408] sm:$0xff]
        %v490 = vld [vmem:[%s408 + $0x8] sm:$0xff]
        %v491 = vld [vmem:[%s408 + $0x10] sm:$0xff]
        %v492 = vld [vmem:[%s408 + $0x18] sm:$0xff]
        %v493 = vld [vmem:[%s408 + $0x20] sm:$0xff]
        %v494 = vld [vmem:[%s408 + $0x28] sm:$0xff]
        %v495 = vld [vmem:[%s408 + $0x30] sm:$0xff]
        %v496 = vld [vmem:[%s408 + $0x38] sm:$0xff]
        %vm497 = vcmask 261120
        %v499 = vsel %vm497, %v467, 0
        %v502 = vsel %vm497, %v468, 0
        %v505 = vsel %vm497, %v469, 0
        %v508 = vsel %vm497, %v489, 0
        %v511 = vsel %vm497, %v490, 0
        %513 = vmatprep.subr.mxu0 0.0
        %514 = vmatpush1.xpose.msra.mxu0 0.0
        %515 = vmatprep.subr.mxu0 0.0
        %516 = vmatpush1.xpose.msra.mxu0 0.0
        %517 = vmatprep.subr.mxu0 0.0
        %518 = vmatpush1.xpose.msra.mxu0 0.0
        %519 = vmatprep.subr.mxu0 0.0
        %520 = vmatpush1.xpose.msra.mxu0 0.0
        %521 = vmatprep.subr.mxu0 0.0
        %522 = vmatpush1.xpose.msra.mxu0 0.0
        %523 = vmatprep.subr.mxu0 0.0
        %524 = vmatpush1.xpose.msra.mxu0 0.0
        %525 = vmatprep.subr.mxu0 0.0
        %526 = vmatpush1.xpose.msra.mxu0 0.0
        %527 = vmatprep.subr.mxu0 0.0
        %528 = vmatpush1.xpose.msra.mxu0 0.0
        %529 = vmatprep.subr.mxu0 0.0
        %530 = vmatpush1.xpose.msra.mxu0 0.0
        %531 = vmatprep.subr.mxu0 0.0
        %532 = vmatpush1.xpose.msra.mxu0 0.0
        %533 = vmatprep.subr.mxu0 0.0
        %534 = vmatpush1.xpose.msra.mxu0 0.0
        %535 = vmatprep.subr.mxu0 0.0
        %536 = vmatpush1.xpose.msra.mxu0 0.0
        %537 = vmatprep.subr.mxu0 0.0
        %538 = vmatpush1.xpose.msra.mxu0 0.0
        %539 = vmatprep.subr.mxu0 0.0
        %540 = vmatpush1.xpose.msra.mxu0 0.0
        %541 = vmatprep.subr.mxu0 0.0
        %542 = vmatpush1.xpose.msra.mxu0 %v511
        %543 = vmatprep.subr.mxu0 0.0
        %544 = vmatpush1.xpose.msra.mxu0 %v508
        %545 = vmatprep.subr.mxu0 0.0
        %546 = vmatpush2.xpose.msra.mxu0 0.0
        %547 = vmatprep.subr.mxu0 0.0
        %548 = vmatpush2.xpose.msra.mxu0 0.0
        %549 = vmatprep.subr.mxu0 0.0
        %550 = vmatpush2.xpose.msra.mxu0 0.0
        %551 = vmatprep.subr.mxu0 0.0
        %552 = vmatpush2.xpose.msra.mxu0 0.0
        %553 = vmatprep.subr.mxu0 0.0
        %554 = vmatpush2.xpose.msra.mxu0 0.0
        %555 = vmatprep.subr.mxu0 0.0
        %556 = vmatpush2.xpose.msra.mxu0 0.0
        %557 = vmatprep.subr.mxu0 0.0
        %558 = vmatpush2.xpose.msra.mxu0 0.0
        %559 = vmatprep.subr.mxu0 0.0
        %560 = vmatpush2.xpose.msra.mxu0 0.0
        %561 = vmatprep.subr.mxu0 0.0
        %562 = vmatpush2.xpose.msra.mxu0 0.0
        %563 = vmatprep.subr.mxu0 0.0
        %564 = vmatpush2.xpose.msra.mxu0 0.0
        %565 = vmatprep.subr.mxu0 0.0
        %566 = vmatpush2.xpose.msra.mxu0 0.0
        %567 = vmatprep.subr.mxu0 0.0
        %568 = vmatpush2.xpose.msra.mxu0 0.0
        %569 = vmatprep.subr.mxu0 0.0
        %570 = vmatpush2.xpose.msra.mxu0 0.0
        %571 = vmatprep.subr.mxu0 0.0
        %572 = vmatpush2.xpose.msra.mxu0 0.0
        %573 = vmatprep.subr.mxu0 0.0
        %574 = vmatpush2.xpose.msra.mxu0 0.0
        %575 = vmatprep.subr.mxu0 0.0
        %576 = vmatpush2.xpose.msra.mxu0 0.0
        %577 = vmatprep.mubr.f32.mxu0 0.0
        %578 = vmatmul.mubr.f32.gmra.mxu0 %v499
        %v579 = vpop.f32.mrf.mxu0
        %v580 = vadd.f32 0.0, %v579
        %v581 = vpop.f32.mrf.mxu0
        %582 = vmatprep.mubr.f32.mxu0 0.0
        %583 = vmatmul.mubr.f32.gmra.mxu0 %v502
        %v584 = vpop.f32.mrf.mxu0
        %v585 = vadd.f32 0.0, %v584
        %v586 = vpop.f32.mrf.mxu0
        %587 = vmatprep.mubr.f32.mxu0 0.0
        %588 = vmatmul.mubr.f32.gmra.mxu0 %v505
        %v589 = vpop.f32.mrf.mxu0
        %v590 = vadd.f32 0.0, %v589
        %v591 = vpop.f32.mrf.mxu0
        %592 = vdwg.mxu0
        %v594 = vsel %vm497, %v470, 0
        %v597 = vsel %vm497, %v471, 0
        %v600 = vsel %vm497, %v472, 0
        %v603 = vsel %vm497, %v491, 0
        %v606 = vsel %vm497, %v492, 0
        %608 = vmatprep.subr.mxu0 0.0
        %609 = vmatpush1.xpose.msra.mxu0 0.0
        %610 = vmatprep.subr.mxu0 0.0
        %611 = vmatpush1.xpose.msra.mxu0 0.0
        %612 = vmatprep.subr.mxu0 0.0
        %613 = vmatpush1.xpose.msra.mxu0 0.0
        %614 = vmatprep.subr.mxu0 0.0
        %615 = vmatpush1.xpose.msra.mxu0 0.0
        %616 = vmatprep.subr.mxu0 0.0
        %617 = vmatpush1.xpose.msra.mxu0 0.0
        %618 = vmatprep.subr.mxu0 0.0
        %619 = vmatpush1.xpose.msra.mxu0 0.0
        %620 = vmatprep.subr.mxu0 0.0
        %621 = vmatpush1.xpose.msra.mxu0 0.0
        %622 = vmatprep.subr.mxu0 0.0
        %623 = vmatpush1.xpose.msra.mxu0 0.0
        %624 = vmatprep.subr.mxu0 0.0
        %625 = vmatpush1.xpose.msra.mxu0 0.0
        %626 = vmatprep.subr.mxu0 0.0
        %627 = vmatpush1.xpose.msra.mxu0 0.0
        %628 = vmatprep.subr.mxu0 0.0
        %629 = vmatpush1.xpose.msra.mxu0 0.0
        %630 = vmatprep.subr.mxu0 0.0
        %631 = vmatpush1.xpose.msra.mxu0 0.0
        %632 = vmatprep.subr.mxu0 0.0
        %633 = vmatpush1.xpose.msra.mxu0 0.0
        %634 = vmatprep.subr.mxu0 0.0
        %635 = vmatpush1.xpose.msra.mxu0 0.0
        %636 = vmatprep.subr.mxu0 0.0
        %637 = vmatpush1.xpose.msra.mxu0 %v606
        %638 = vmatprep.subr.mxu0 0.0
        %639 = vmatpush1.xpose.msra.mxu0 %v603
        %640 = vmatprep.subr.mxu0 0.0
        %641 = vmatpush2.xpose.msra.mxu0 0.0
        %642 = vmatprep.subr.mxu0 0.0
        %643 = vmatpush2.xpose.msra.mxu0 0.0
        %644 = vmatprep.subr.mxu0 0.0
        %645 = vmatpush2.xpose.msra.mxu0 0.0
        %646 = vmatprep.subr.mxu0 0.0
        %647 = vmatpush2.xpose.msra.mxu0 0.0
        %648 = vmatprep.subr.mxu0 0.0
        %649 = vmatpush2.xpose.msra.mxu0 0.0
        %650 = vmatprep.subr.mxu0 0.0
        %651 = vmatpush2.xpose.msra.mxu0 0.0
        %652 = vmatprep.subr.mxu0 0.0
        %653 = vmatpush2.xpose.msra.mxu0 0.0
        %654 = vmatprep.subr.mxu0 0.0
        %655 = vmatpush2.xpose.msra.mxu0 0.0
        %656 = vmatprep.subr.mxu0 0.0
        %657 = vmatpush2.xpose.msra.mxu0 0.0
        %658 = vmatprep.subr.mxu0 0.0
        %659 = vmatpush2.xpose.msra.mxu0 0.0
        %660 = vmatprep.subr.mxu0 0.0
        %661 = vmatpush2.xpose.msra.mxu0 0.0
        %662 = vmatprep.subr.mxu0 0.0
        %663 = vmatpush2.xpose.msra.mxu0 0.0
        %664 = vmatprep.subr.mxu0 0.0
        %665 = vmatpush2.xpose.msra.mxu0 0.0
        %666 = vmatprep.subr.mxu0 0.0
        %667 = vmatpush2.xpose.msra.mxu0 0.0
        %668 = vmatprep.subr.mxu0 0.0
        %669 = vmatpush2.xpose.msra.mxu0 0.0
        %670 = vmatprep.subr.mxu0 0.0
        %671 = vmatpush2.xpose.msra.mxu0 0.0
        %672 = vmatprep.mubr.f32.mxu0 0.0
        %673 = vmatmul.mubr.f32.gmra.mxu0 %v594
        %v674 = vpop.f32.mrf.mxu0
        %v675 = vadd.f32 0.0, %v674
        %v676 = vpop.f32.mrf.mxu0
        %677 = vmatprep.mubr.f32.mxu0 0.0
        %678 = vmatmul.mubr.f32.gmra.mxu0 %v597
        %v679 = vpop.f32.mrf.mxu0
        %v680 = vadd.f32 0.0, %v679
        %v681 = vpop.f32.mrf.mxu0
        %682 = vmatprep.mubr.f32.mxu0 0.0
        %683 = vmatmul.mubr.f32.gmra.mxu0 %v600
        %v684 = vpop.f32.mrf.mxu0
        %v685 = vadd.f32 0.0, %v684
        %v686 = vpop.f32.mrf.mxu0
        %687 = vdwg.mxu0
        %v689 = vsel %vm497, %v473, 0
        %v692 = vsel %vm497, %v474, 0
        %v695 = vsel %vm497, %v475, 0
        %v698 = vsel %vm497, %v493, 0
        %v701 = vsel %vm497, %v494, 0
        %703 = vmatprep.subr.mxu0 0.0
        %704 = vmatpush1.xpose.msra.mxu0 0.0
        %705 = vmatprep.subr.mxu0 0.0
        %706 = vmatpush1.xpose.msra.mxu0 0.0
        %707 = vmatprep.subr.mxu0 0.0
        %708 = vmatpush1.xpose.msra.mxu0 0.0
        %709 = vmatprep.subr.mxu0 0.0
        %710 = vmatpush1.xpose.msra.mxu0 0.0
        %711 = vmatprep.subr.mxu0 0.0
        %712 = vmatpush1.xpose.msra.mxu0 0.0
        %713 = vmatprep.subr.mxu0 0.0
        %714 = vmatpush1.xpose.msra.mxu0 0.0
        %715 = vmatprep.subr.mxu0 0.0
        %716 = vmatpush1.xpose.msra.mxu0 0.0
        %717 = vmatprep.subr.mxu0 0.0
        %718 = vmatpush1.xpose.msra.mxu0 0.0
        %719 = vmatprep.subr.mxu0 0.0
        %720 = vmatpush1.xpose.msra.mxu0 0.0
        %721 = vmatprep.subr.mxu0 0.0
        %722 = vmatpush1.xpose.msra.mxu0 0.0
        %723 = vmatprep.subr.mxu0 0.0
        %724 = vmatpush1.xpose.msra.mxu0 0.0
        %725 = vmatprep.subr.mxu0 0.0
        %726 = vmatpush1.xpose.msra.mxu0 0.0
        %727 = vmatprep.subr.mxu0 0.0
        %728 = vmatpush1.xpose.msra.mxu0 0.0
        %729 = vmatprep.subr.mxu0 0.0
        %730 = vmatpush1.xpose.msra.mxu0 0.0
        %731 = vmatprep.subr.mxu0 0.0
        %732 = vmatpush1.xpose.msra.mxu0 %v701
        %733 = vmatprep.subr.mxu0 0.0
        %734 = vmatpush1.xpose.msra.mxu0 %v698
        %735 = vmatprep.subr.mxu0 0.0
        %736 = vmatpush2.xpose.msra.mxu0 0.0
        %737 = vmatprep.subr.mxu0 0.0
        %738 = vmatpush2.xpose.msra.mxu0 0.0
        %739 = vmatprep.subr.mxu0 0.0
        %740 = vmatpush2.xpose.msra.mxu0 0.0
        %741 = vmatprep.subr.mxu0 0.0
        %742 = vmatpush2.xpose.msra.mxu0 0.0
        %743 = vmatprep.subr.mxu0 0.0
        %744 = vmatpush2.xpose.msra.mxu0 0.0
        %745 = vmatprep.subr.mxu0 0.0
        %746 = vmatpush2.xpose.msra.mxu0 0.0
        %747 = vmatprep.subr.mxu0 0.0
        %748 = vmatpush2.xpose.msra.mxu0 0.0
        %749 = vmatprep.subr.mxu0 0.0
        %750 = vmatpush2.xpose.msra.mxu0 0.0
        %751 = vmatprep.subr.mxu0 0.0
        %752 = vmatpush2.xpose.msra.mxu0 0.0
        %753 = vmatprep.subr.mxu0 0.0
        %754 = vmatpush2.xpose.msra.mxu0 0.0
        %755 = vmatprep.subr.mxu0 0.0
        %756 = vmatpush2.xpose.msra.mxu0 0.0
        %757 = vmatprep.subr.mxu0 0.0
        %758 = vmatpush2.xpose.msra.mxu0 0.0
        %759 = vmatprep.subr.mxu0 0.0
        %760 = vmatpush2.xpose.msra.mxu0 0.0
        %761 = vmatprep.subr.mxu0 0.0
        %762 = vmatpush2.xpose.msra.mxu0 0.0
        %763 = vmatprep.subr.mxu0 0.0
        %764 = vmatpush2.xpose.msra.mxu0 0.0
        %765 = vmatprep.subr.mxu0 0.0
        %766 = vmatpush2.xpose.msra.mxu0 0.0
        %767 = vmatprep.mubr.f32.mxu0 0.0
        %768 = vmatmul.mubr.f32.gmra.mxu0 %v689
        %v769 = vpop.f32.mrf.mxu0
        %v770 = vadd.f32 0.0, %v769
        %v771 = vpop.f32.mrf.mxu0
        %772 = vmatprep.mubr.f32.mxu0 0.0
        %773 = vmatmul.mubr.f32.gmra.mxu0 %v692
        %v774 = vpop.f32.mrf.mxu0
        %v775 = vadd.f32 0.0, %v774
        %v776 = vpop.f32.mrf.mxu0
        %777 = vmatprep.mubr.f32.mxu0 0.0
        %778 = vmatmul.mubr.f32.gmra.mxu0 %v695
        %v779 = vpop.f32.mrf.mxu0
        %v780 = vadd.f32 0.0, %v779
        %v781 = vpop.f32.mrf.mxu0
        %782 = vdwg.mxu0
        %v784 = vsel %vm497, %v476, 0
        %v787 = vsel %vm497, %v477, 0
        %v790 = vsel %vm497, %v478, 0
        %v793 = vsel %vm497, %v495, 0
        %v796 = vsel %vm497, %v496, 0
        %798 = vmatprep.subr.mxu0 0.0
        %799 = vmatpush1.xpose.msra.mxu0 0.0
        %800 = vmatprep.subr.mxu0 0.0
        %801 = vmatpush1.xpose.msra.mxu0 0.0
        %802 = vmatprep.subr.mxu0 0.0
        %803 = vmatpush1.xpose.msra.mxu0 0.0
        %804 = vmatprep.subr.mxu0 0.0
        %805 = vmatpush1.xpose.msra.mxu0 0.0
        %806 = vmatprep.subr.mxu0 0.0
        %807 = vmatpush1.xpose.msra.mxu0 0.0
        %808 = vmatprep.subr.mxu0 0.0
        %809 = vmatpush1.xpose.msra.mxu0 0.0
        %810 = vmatprep.subr.mxu0 0.0
        %811 = vmatpush1.xpose.msra.mxu0 0.0
        %812 = vmatprep.subr.mxu0 0.0
        %813 = vmatpush1.xpose.msra.mxu0 0.0
        %814 = vmatprep.subr.mxu0 0.0
        %815 = vmatpush1.xpose.msra.mxu0 0.0
        %816 = vmatprep.subr.mxu0 0.0
        %817 = vmatpush1.xpose.msra.mxu0 0.0
        %818 = vmatprep.subr.mxu0 0.0
        %819 = vmatpush1.xpose.msra.mxu0 0.0
        %820 = vmatprep.subr.mxu0 0.0
        %821 = vmatpush1.xpose.msra.mxu0 0.0
        %822 = vmatprep.subr.mxu0 0.0
        %823 = vmatpush1.xpose.msra.mxu0 0.0
        %824 = vmatprep.subr.mxu0 0.0
        %825 = vmatpush1.xpose.msra.mxu0 0.0
        %826 = vmatprep.subr.mxu0 0.0
        %827 = vmatpush1.xpose.msra.mxu0 %v796
        %828 = vmatprep.subr.mxu0 0.0
        %829 = vmatpush1.xpose.msra.mxu0 %v793
        %830 = vmatprep.subr.mxu0 0.0
        %831 = vmatpush2.xpose.msra.mxu0 0.0
        %832 = vmatprep.subr.mxu0 0.0
        %833 = vmatpush2.xpose.msra.mxu0 0.0
        %834 = vmatprep.subr.mxu0 0.0
        %835 = vmatpush2.xpose.msra.mxu0 0.0
        %836 = vmatprep.subr.mxu0 0.0
        %837 = vmatpush2.xpose.msra.mxu0 0.0
        %838 = vmatprep.subr.mxu0 0.0
        %839 = vmatpush2.xpose.msra.mxu0 0.0
        %840 = vmatprep.subr.mxu0 0.0
        %841 = vmatpush2.xpose.msra.mxu0 0.0
        %842 = vmatprep.subr.mxu0 0.0
        %843 = vmatpush2.xpose.msra.mxu0 0.0
        %844 = vmatprep.subr.mxu0 0.0
        %845 = vmatpush2.xpose.msra.mxu0 0.0
        %846 = vmatprep.subr.mxu0 0.0
        %847 = vmatpush2.xpose.msra.mxu0 0.0
        %848 = vmatprep.subr.mxu0 0.0
        %849 = vmatpush2.xpose.msra.mxu0 0.0
        %850 = vmatprep.subr.mxu0 0.0
        %851 = vmatpush2.xpose.msra.mxu0 0.0
        %852 = vmatprep.subr.mxu0 0.0
        %853 = vmatpush2.xpose.msra.mxu0 0.0
        %854 = vmatprep.subr.mxu0 0.0
        %855 = vmatpush2.xpose.msra.mxu0 0.0
        %856 = vmatprep.subr.mxu0 0.0
        %857 = vmatpush2.xpose.msra.mxu0 0.0
        %858 = vmatprep.subr.mxu0 0.0
        %859 = vmatpush2.xpose.msra.mxu0 0.0
        %860 = vmatprep.subr.mxu0 0.0
        %861 = vmatpush2.xpose.msra.mxu0 0.0
        %862 = vmatprep.mubr.f32.mxu0 0.0
        %863 = vmatmul.mubr.f32.gmra.mxu0 %v784
        %v864 = vpop.f32.mrf.mxu0
        %v865 = vadd.f32 0.0, %v864
        %v866 = vpop.f32.mrf.mxu0
        %867 = vmatprep.mubr.f32.mxu0 0.0
        %868 = vmatmul.mubr.f32.gmra.mxu0 %v787
        %v869 = vpop.f32.mrf.mxu0
        %v870 = vadd.f32 0.0, %v869
        %v871 = vpop.f32.mrf.mxu0
        %872 = vmatprep.mubr.f32.mxu0 0.0
        %873 = vmatmul.mubr.f32.gmra.mxu0 %v790
        %v874 = vpop.f32.mrf.mxu0
        %v875 = vadd.f32 0.0, %v874
        %v876 = vpop.f32.mrf.mxu0
        %877 = vdwg.mxu0
        %vm878 = vcmask 130048
        %v879 = vsel %vm878, %v580, -inf
        %880 = vmax.xlane.f32.xlu0 %v879
        %v881 = vpop.xlane.xlu0 %880
        %v882 = vsel %vm878, %v585, -inf
        %883 = vmax.xlane.f32.xlu0 %v882
        %v884 = vpop.xlane.xlu0 %883
        %vm885 = vcmask 122880
        %v886 = vsel %vm885, %v590, -inf
        %887 = vmax.xlane.f32.xlu0 %v886
        %v888 = vpop.xlane.xlu0 %887
        %v889 = vsel %vm878, %v675, -inf
        %890 = vmax.xlane.f32.xlu0 %v889
        %v891 = vpop.xlane.xlu0 %890
        %v892 = vsel %vm878, %v680, -inf
        %893 = vmax.xlane.f32.xlu0 %v892
        %v894 = vpop.xlane.xlu0 %893
        %v895 = vsel %vm885, %v685, -inf
        %896 = vmax.xlane.f32.xlu0 %v895
        %v897 = vpop.xlane.xlu0 %896
        %v898 = vsel %vm878, %v770, -inf
        %899 = vmax.xlane.f32.xlu0 %v898
        %v900 = vpop.xlane.xlu0 %899
        %v901 = vsel %vm878, %v775, -inf
        %902 = vmax.xlane.f32.xlu0 %v901
        %v903 = vpop.xlane.xlu0 %902
        %v904 = vsel %vm885, %v780, -inf
        %905 = vmax.xlane.f32.xlu0 %v904
        %v906 = vpop.xlane.xlu0 %905
        %v907 = vsel %vm878, %v865, -inf
        %908 = vmax.xlane.f32.xlu0 %v907
        %v909 = vpop.xlane.xlu0 %908
        %v910 = vsel %vm878, %v870, -inf
        %911 = vmax.xlane.f32.xlu0 %v910
        %v912 = vpop.xlane.xlu0 %911
        %v913 = vsel %vm885, %v875, -inf
        %914 = vmax.xlane.f32.xlu0 %v913
        %v915 = vpop.xlane.xlu0 %914
        %v916 = vsub.f32 %v580, %v881
        %v917 = vsub.f32 %v585, %v884
        %v918 = vsub.f32 %v590, %v888
        %v919 = vsub.f32 %v675, %v891
        %v920 = vsub.f32 %v680, %v894
        %v921 = vsub.f32 %v685, %v897
        %v922 = vsub.f32 %v770, %v900
        %v923 = vsub.f32 %v775, %v903
        %v924 = vsub.f32 %v780, %v906
        %v925 = vsub.f32 %v865, %v909
        %v926 = vsub.f32 %v870, %v912
        %v927 = vsub.f32 %v875, %v915
        %v928 = vmul.f32 %v916, 1.442695
        %v929 = vpow.pop %v928
        %v930 = vmul.f32 %v917, 1.442695
        %v931 = vpow.pop %v930
        %v932 = vmul.f32 %v918, 1.442695
        %v933 = vpow.pop %v932
        %v934 = vmul.f32 %v919, 1.442695
        %v935 = vpow.pop %v934
        %v936 = vmul.f32 %v920, 1.442695
        %v937 = vpow.pop %v936
        %v938 = vmul.f32 %v921, 1.442695
        %v939 = vpow.pop %v938
        %v940 = vmul.f32 %v922, 1.442695
        %v941 = vpow.pop %v940
        %v942 = vmul.f32 %v923, 1.442695
        %v943 = vpow.pop %v942
        %v944 = vmul.f32 %v924, 1.442695
        %v945 = vpow.pop %v944
        %v946 = vmul.f32 %v925, 1.442695
        %v947 = vpow.pop %v946
        %v948 = vmul.f32 %v926, 1.442695
        %v949 = vpow.pop %v948
        %v950 = vmul.f32 %v927, 1.442695
        %v951 = vpow.pop %v950
        %v952 = vsel %vm878, %v929, 0.0
        %953 = vadd.xlane.f32.xlu0 %v952
        %v954 = vpop.xlane.xlu0 %953
        %v955 = vsel %vm878, %v931, 0.0
        %956 = vadd.xlane.f32.xlu0 %v955
        %v957 = vpop.xlane.xlu0 %956
        %v958 = vsel %vm885, %v933, 0.0
        %959 = vadd.xlane.f32.xlu0 %v958
        %v960 = vpop.xlane.xlu0 %959
        %v961 = vsel %vm878, %v935, 0.0
        %962 = vadd.xlane.f32.xlu0 %v961
        %v963 = vpop.xlane.xlu0 %962
        %v964 = vsel %vm878, %v937, 0.0
        %965 = vadd.xlane.f32.xlu0 %v964
        %v966 = vpop.xlane.xlu0 %965
        %v967 = vsel %vm885, %v939, 0.0
        %968 = vadd.xlane.f32.xlu0 %v967
        %v969 = vpop.xlane.xlu0 %968
        %v970 = vsel %vm878, %v941, 0.0
        %971 = vadd.xlane.f32.xlu0 %v970
        %v972 = vpop.xlane.xlu0 %971
        %v973 = vsel %vm878, %v943, 0.0
        %974 = vadd.xlane.f32.xlu0 %v973
        %v975 = vpop.xlane.xlu0 %974
        %v976 = vsel %vm885, %v945, 0.0
        %977 = vadd.xlane.f32.xlu0 %v976
        %v978 = vpop.xlane.xlu0 %977
        %v979 = vsel %vm878, %v947, 0.0
        %980 = vadd.xlane.f32.xlu0 %v979
        %v981 = vpop.xlane.xlu0 %980
        %v982 = vsel %vm878, %v949, 0.0
        %983 = vadd.xlane.f32.xlu0 %v982
        %v984 = vpop.xlane.xlu0 %983
        %v985 = vsel %vm885, %v951, 0.0
        %986 = vadd.xlane.f32.xlu0 %v985
        %v987 = vpop.xlane.xlu0 %986
        %v988 = vrcp.pop %v954
        %v989 = vrcp.pop %v957
        %v990 = vrcp.pop %v960
        %v991 = vrcp.pop %v963
        %v992 = vrcp.pop %v966
        %v993 = vrcp.pop %v969
        %v994 = vrcp.pop %v972
        %v995 = vrcp.pop %v975
        %v996 = vrcp.pop %v978
        %v997 = vrcp.pop %v981
        %v998 = vrcp.pop %v984
        %v999 = vrcp.pop %v987
        %v1000 = vmul.f32 %v929, %v988
        %v1001 = vmul.f32 %v931, %v989
        %v1002 = vmul.f32 %v933, %v990
        %v1003 = vmul.f32 %v935, %v991
        %v1004 = vmul.f32 %v937, %v992
        %v1005 = vmul.f32 %v939, %v993
        %v1006 = vmul.f32 %v941, %v994
        %v1007 = vmul.f32 %v943, %v995
        %v1008 = vmul.f32 %v945, %v996
        %v1009 = vmul.f32 %v947, %v997
        %v1010 = vmul.f32 %v949, %v998
        %v1011 = vmul.f32 %v951, %v999
        %v1012 = vsel %vm878, %v1000, 0.0
        %v1013 = vsel %vm878, %v1003, 0.0
        %v1014 = vadd.f32 %v1012, %v1013
        %v1015 = vsel %vm878, %v1006, 0.0
        %v1016 = vadd.f32 %v1014, %v1015
        %v1017 = vsel %vm878, %v1009, 0.0
        %v1018 = vadd.f32 %v1016, %v1017
        %v1019 = vsel %vm878, %v1001, 0.0
        %v1020 = vsel %vm878, %v1004, 0.0
        %v1021 = vadd.f32 %v1019, %v1020
        %v1022 = vsel %vm878, %v1007, 0.0
        %v1023 = vadd.f32 %v1021, %v1022
        %v1024 = vsel %vm878, %v1010, 0.0
        %v1025 = vadd.f32 %v1023, %v1024
        %v1026 = vsel %vm885, %v1002, 0.0
        %v1027 = vsel %vm885, %v1005, 0.0
        %v1028 = vadd.f32 %v1026, %v1027
        %v1029 = vsel %vm885, %v1008, 0.0
        %v1030 = vadd.f32 %v1028, %v1029
        %v1031 = vsel %vm885, %v1011, 0.0
        %v1032 = vadd.f32 %v1030, %v1031
        %v1033 = vrcp.pop 4.0
        %v1034 = vmul.f32 %v1018, %v1033
        %v1035 = vmul.f32 %v1025, %v1033
        %v1036 = vmul.f32 %v1032, %v1033
        %v1037 = vlaneseq
        %v1038 = vshrl.u32 %v1037, 7
        %v1039 = vsub.s32 0, %v1038
        %v1040 = vrot.slane %v1034, %v1039
        %1042 = vbcast.lane.b32.xlu0 %v1040, 256
        %v1043 = vpop.permute.xlu0 %1042
        %s1045 = sor.u32 256, 8
        %1046 = vbcast.lane.b32.xlu0 %v1040, %s1045
        %v1047 = vpop.permute.xlu0 %1046
        %v1048 = vlaneseq
        %v1049 = vshrl.u32 %v1048, 7
        %v1050 = vsub.s32 1, %v1049
        %v1051 = vrot.slane %v1034, %v1050
        %1053 = vbcast.lane.b32.xlu0 %v1051, 256
        %v1054 = vpop.permute.xlu0 %1053
        %s1056 = sor.u32 256, 8
        %1057 = vbcast.lane.b32.xlu0 %v1051, %s1056
        %v1058 = vpop.permute.xlu0 %1057
        %v1059 = vlaneseq
        %v1060 = vshrl.u32 %v1059, 7
        %v1061 = vsub.s32 2, %v1060
        %v1062 = vrot.slane %v1034, %v1061
        %1064 = vbcast.lane.b32.xlu0 %v1062, 256
        %v1065 = vpop.permute.xlu0 %1064
        %s1067 = sor.u32 256, 8
        %1068 = vbcast.lane.b32.xlu0 %v1062, %s1067
        %v1069 = vpop.permute.xlu0 %1068
        %v1070 = vlaneseq
        %v1071 = vshrl.u32 %v1070, 7
        %v1072 = vsub.s32 3, %v1071
        %v1073 = vrot.slane %v1034, %v1072
        %1075 = vbcast.lane.b32.xlu0 %v1073, 256
        %v1076 = vpop.permute.xlu0 %1075
        %s1078 = sor.u32 256, 8
        %1079 = vbcast.lane.b32.xlu0 %v1073, %s1078
        %v1080 = vpop.permute.xlu0 %1079
        %v1081 = vlaneseq
        %v1082 = vshrl.u32 %v1081, 7
        %v1083 = vsub.s32 4, %v1082
        %v1084 = vrot.slane %v1034, %v1083
        %1086 = vbcast.lane.b32.xlu0 %v1084, 256
        %v1087 = vpop.permute.xlu0 %1086
        %s1089 = sor.u32 256, 8
        %1090 = vbcast.lane.b32.xlu0 %v1084, %s1089
        %v1091 = vpop.permute.xlu0 %1090
        %v1092 = vlaneseq
        %v1093 = vshrl.u32 %v1092, 7
        %v1094 = vsub.s32 5, %v1093
        %v1095 = vrot.slane %v1034, %v1094
        %1097 = vbcast.lane.b32.xlu0 %v1095, 256
        %v1098 = vpop.permute.xlu0 %1097
        %s1100 = sor.u32 256, 8
        %1101 = vbcast.lane.b32.xlu0 %v1095, %s1100
        %v1102 = vpop.permute.xlu0 %1101
        %v1103 = vlaneseq
        %v1104 = vshrl.u32 %v1103, 7
        %v1105 = vsub.s32 6, %v1104
        %v1106 = vrot.slane %v1034, %v1105
        %1108 = vbcast.lane.b32.xlu0 %v1106, 256
        %v1109 = vpop.permute.xlu0 %1108
        %s1111 = sor.u32 256, 8
        %1112 = vbcast.lane.b32.xlu0 %v1106, %s1111
        %v1113 = vpop.permute.xlu0 %1112
        %v1114 = vlaneseq
        %v1115 = vshrl.u32 %v1114, 7
        %v1116 = vsub.s32 7, %v1115
        %v1117 = vrot.slane %v1034, %v1116
        %1119 = vbcast.lane.b32.xlu0 %v1117, 256
        %v1120 = vpop.permute.xlu0 %1119
        %s1122 = sor.u32 256, 8
        %1123 = vbcast.lane.b32.xlu0 %v1117, %s1122
        %v1124 = vpop.permute.xlu0 %1123
        %v1125 = vlaneseq
        %v1126 = vshrl.u32 %v1125, 7
        %v1127 = vsub.s32 0, %v1126
        %v1128 = vrot.slane %v1035, %v1127
        %1130 = vbcast.lane.b32.xlu0 %v1128, 256
        %v1131 = vpop.permute.xlu0 %1130
        %s1133 = sor.u32 256, 8
        %1134 = vbcast.lane.b32.xlu0 %v1128, %s1133
        %v1135 = vpop.permute.xlu0 %1134
        %v1136 = vlaneseq
        %v1137 = vshrl.u32 %v1136, 7
        %v1138 = vsub.s32 1, %v1137
        %v1139 = vrot.slane %v1035, %v1138
        %1141 = vbcast.lane.b32.xlu0 %v1139, 256
        %v1142 = vpop.permute.xlu0 %1141
        %s1144 = sor.u32 256, 8
        %1145 = vbcast.lane.b32.xlu0 %v1139, %s1144
        %v1146 = vpop.permute.xlu0 %1145
        %v1147 = vlaneseq
        %v1148 = vshrl.u32 %v1147, 7
        %v1149 = vsub.s32 2, %v1148
        %v1150 = vrot.slane %v1035, %v1149
        %1152 = vbcast.lane.b32.xlu0 %v1150, 256
        %v1153 = vpop.permute.xlu0 %1152
        %s1155 = sor.u32 256, 8
        %1156 = vbcast.lane.b32.xlu0 %v1150, %s1155
        %v1157 = vpop.permute.xlu0 %1156
        %v1158 = vlaneseq
        %v1159 = vshrl.u32 %v1158, 7
        %v1160 = vsub.s32 3, %v1159
        %v1161 = vrot.slane %v1035, %v1160
        %1163 = vbcast.lane.b32.xlu0 %v1161, 256
        %v1164 = vpop.permute.xlu0 %1163
        %s1166 = sor.u32 256, 8
        %1167 = vbcast.lane.b32.xlu0 %v1161, %s1166
        %v1168 = vpop.permute.xlu0 %1167
        %v1169 = vlaneseq
        %v1170 = vshrl.u32 %v1169, 7
        %v1171 = vsub.s32 4, %v1170
        %v1172 = vrot.slane %v1035, %v1171
        %1174 = vbcast.lane.b32.xlu0 %v1172, 256
        %v1175 = vpop.permute.xlu0 %1174
        %s1177 = sor.u32 256, 8
        %1178 = vbcast.lane.b32.xlu0 %v1172, %s1177
        %v1179 = vpop.permute.xlu0 %1178
        %v1180 = vlaneseq
        %v1181 = vshrl.u32 %v1180, 7
        %v1182 = vsub.s32 5, %v1181
        %v1183 = vrot.slane %v1035, %v1182
        %1185 = vbcast.lane.b32.xlu0 %v1183, 256
        %v1186 = vpop.permute.xlu0 %1185
        %s1188 = sor.u32 256, 8
        %1189 = vbcast.lane.b32.xlu0 %v1183, %s1188
        %v1190 = vpop.permute.xlu0 %1189
        %v1191 = vlaneseq
        %v1192 = vshrl.u32 %v1191, 7
        %v1193 = vsub.s32 6, %v1192
        %v1194 = vrot.slane %v1035, %v1193
        %1196 = vbcast.lane.b32.xlu0 %v1194, 256
        %v1197 = vpop.permute.xlu0 %1196
        %s1199 = sor.u32 256, 8
        %1200 = vbcast.lane.b32.xlu0 %v1194, %s1199
        %v1201 = vpop.permute.xlu0 %1200
        %v1202 = vlaneseq
        %v1203 = vshrl.u32 %v1202, 7
        %v1204 = vsub.s32 7, %v1203
        %v1205 = vrot.slane %v1035, %v1204
        %1207 = vbcast.lane.b32.xlu0 %v1205, 256
        %v1208 = vpop.permute.xlu0 %1207
        %s1210 = sor.u32 256, 8
        %1211 = vbcast.lane.b32.xlu0 %v1205, %s1210
        %v1212 = vpop.permute.xlu0 %1211
        %v1213 = vlaneseq
        %v1214 = vshrl.u32 %v1213, 7
        %v1215 = vsub.s32 0, %v1214
        %v1216 = vrot.slane %v1036, %v1215
        %1218 = vbcast.lane.b32.xlu0 %v1216, 256
        %v1219 = vpop.permute.xlu0 %1218
        %s1221 = sor.u32 256, 8
        %1222 = vbcast.lane.b32.xlu0 %v1216, %s1221
        %v1223 = vpop.permute.xlu0 %1222
        %v1224 = vld [vmem:[%s432] sm:$0xf]
        %v1225 = vld [vmem:[%s432 + $0x4] sm:$0xf]
        %v1226 = vld [vmem:[%s432 + $0x8] sm:$0xf]
        %v1227 = vld [vmem:[%s432 + $0xc] sm:$0xf]
        %v1228 = vld [vmem:[%s432 + $0x10] sm:$0xf]
        %v1229 = vld [vmem:[%s432 + $0x14] sm:$0xf]
        %v1230 = vld [vmem:[%s432 + $0x18] sm:$0xf]
        %v1231 = vld [vmem:[%s432 + $0x1c] sm:$0xf]
        %v1232 = vld [vmem:[%s432 + $0x20] sm:$0xf]
        %v1233 = vld [vmem:[%s432 + $0x24] sm:$0xf]
        %v1234 = vld [vmem:[%s432 + $0x28] sm:$0xf]
        %v1235 = vld [vmem:[%s432 + $0x2c] sm:$0xf]
        %v1236 = vld [vmem:[%s432 + $0x30] sm:$0xf]
        %v1237 = vld [vmem:[%s432 + $0x34] sm:$0xf]
        %v1238 = vld [vmem:[%s432 + $0x38] sm:$0xf]
        %v1239 = vld [vmem:[%s432 + $0x3c] sm:$0xf]
        %v1240 = vld [vmem:[%s432 + $0x40] sm:$0xf]
        %v1241 = vld [vmem:[%s432 + $0x44] sm:$0xf]
        %v1242 = vld [vmem:[%s432 + $0x48] sm:$0xf]
        %v1243 = vld [vmem:[%s432 + $0x4c] sm:$0xf]
        %v1244 = vld [vmem:[%s432 + $0x50] sm:$0xf]
        %v1245 = vld [vmem:[%s432 + $0x54] sm:$0xf]
        %v1246 = vld [vmem:[%s432 + $0x58] sm:$0xf]
        %v1247 = vld [vmem:[%s432 + $0x5c] sm:$0xf]
        %v1248 = vld [vmem:[%s432 + $0x60] sm:$0xf]
        %v1249 = vld [vmem:[%s432 + $0x64] sm:$0xf]
        %v1250 = vld [vmem:[%s432 + $0x68] sm:$0xf]
        %v1251 = vld [vmem:[%s432 + $0x6c] sm:$0xf]
        %v1252 = vld [vmem:[%s432 + $0x70] sm:$0xf]
        %v1253 = vld [vmem:[%s432 + $0x74] sm:$0xf]
        %v1254 = vld [vmem:[%s432 + $0x78] sm:$0xf]
        %v1255 = vld [vmem:[%s432 + $0x7c] sm:$0xf]
        %v1256 = vld [vmem:[%s432 + $0x80] sm:$0xf]
        %v1257 = vld [vmem:[%s432 + $0x84] sm:$0xf]
        %v1258 = vunpack.c.l.bf16 %v1224
        %v1259 = vunpack.c.l.bf16 %v1225
        %v1260 = vunpack.c.l.bf16 %v1226
        %v1261 = vunpack.c.l.bf16 %v1227
        %v1262 = vunpack.c.l.bf16 %v1228
        %v1263 = vunpack.c.l.bf16 %v1229
        %v1264 = vunpack.c.l.bf16 %v1230
        %v1265 = vunpack.c.l.bf16 %v1231
        %v1266 = vunpack.c.l.bf16 %v1232
        %v1267 = vunpack.c.l.bf16 %v1233
        %v1268 = vunpack.c.l.bf16 %v1234
        %v1269 = vunpack.c.l.bf16 %v1235
        %v1270 = vunpack.c.l.bf16 %v1236
        %v1271 = vunpack.c.l.bf16 %v1237
        %v1272 = vunpack.c.l.bf16 %v1238
        %v1273 = vunpack.c.l.bf16 %v1239
        %v1274 = vunpack.c.l.bf16 %v1240
        %v1275 = vunpack.c.l.bf16 %v1241
        %v1276 = vunpack.c.l.bf16 %v1242
        %v1277 = vunpack.c.l.bf16 %v1243
        %v1278 = vunpack.c.l.bf16 %v1244
        %v1279 = vunpack.c.l.bf16 %v1245
        %v1280 = vunpack.c.l.bf16 %v1246
        %v1281 = vunpack.c.l.bf16 %v1247
        %v1282 = vunpack.c.l.bf16 %v1248
        %v1283 = vunpack.c.l.bf16 %v1249
        %v1284 = vunpack.c.l.bf16 %v1250
        %v1285 = vunpack.c.l.bf16 %v1251
        %v1286 = vunpack.c.l.bf16 %v1252
        %v1287 = vunpack.c.l.bf16 %v1253
        %v1288 = vunpack.c.l.bf16 %v1254
        %v1289 = vunpack.c.l.bf16 %v1255
        %v1290 = vunpack.c.l.bf16 %v1256
        %v1291 = vunpack.c.l.bf16 %v1257
        %v1292 = vmul.f32 %v1043, %v1258
        %v1293 = vmul.f32 %v1047, %v1259
        %v1294 = vmul.f32 %v1054, %v1260
        %v1295 = vmul.f32 %v1058, %v1261
        %v1296 = vmul.f32 %v1065, %v1262
        %v1297 = vmul.f32 %v1069, %v1263
        %v1298 = vmul.f32 %v1076, %v1264
        %v1299 = vmul.f32 %v1080, %v1265
        %v1300 = vmul.f32 %v1087, %v1266
        %v1301 = vmul.f32 %v1091, %v1267
        %v1302 = vmul.f32 %v1098, %v1268
        %v1303 = vmul.f32 %v1102, %v1269
        %v1304 = vmul.f32 %v1109, %v1270
        %v1305 = vmul.f32 %v1113, %v1271
        %v1306 = vmul.f32 %v1120, %v1272
        %v1307 = vmul.f32 %v1124, %v1273
        %v1308 = vmul.f32 %v1131, %v1274
        %v1309 = vmul.f32 %v1135, %v1275
        %v1310 = vmul.f32 %v1142, %v1276
        %v1311 = vmul.f32 %v1146, %v1277
        %v1312 = vmul.f32 %v1153, %v1278
        %v1313 = vmul.f32 %v1157, %v1279
        %v1314 = vmul.f32 %v1164, %v1280
        %v1315 = vmul.f32 %v1168, %v1281
        %v1316 = vmul.f32 %v1175, %v1282
        %v1317 = vmul.f32 %v1179, %v1283
        %v1318 = vmul.f32 %v1186, %v1284
        %v1319 = vmul.f32 %v1190, %v1285
        %v1320 = vmul.f32 %v1197, %v1286
        %v1321 = vmul.f32 %v1201, %v1287
        %v1322 = vmul.f32 %v1208, %v1288
        %v1323 = vmul.f32 %v1212, %v1289
        %v1324 = vmul.f32 %v1219, %v1290
        %v1325 = vmul.f32 %v1223, %v1291
        %v1326 = vadd.f32 %v1292, %v1293
        %v1327 = vrot.slane %v1326, 4
        %v1328 = vadd.f32 %v1326, %v1327
        %v1329 = vrot.slane %v1328, 2
        %v1330 = vadd.f32 %v1328, %v1329
        %v1331 = vrot.slane %v1330, 1
        %v1332 = vadd.f32 %v1330, %v1331
        %v1333 = vadd.f32 %v1294, %v1295
        %v1334 = vrot.slane %v1333, 4
        %v1335 = vadd.f32 %v1333, %v1334
        %v1336 = vrot.slane %v1335, 2
        %v1337 = vadd.f32 %v1335, %v1336
        %v1338 = vrot.slane %v1337, 1
        %v1339 = vadd.f32 %v1337, %v1338
        %v1340 = vadd.f32 %v1296, %v1297
        %v1341 = vrot.slane %v1340, 4
        %v1342 = vadd.f32 %v1340, %v1341
        %v1343 = vrot.slane %v1342, 2
        %v1344 = vadd.f32 %v1342, %v1343
        %v1345 = vrot.slane %v1344, 1
        %v1346 = vadd.f32 %v1344, %v1345
        %v1347 = vadd.f32 %v1298, %v1299
        %v1348 = vrot.slane %v1347, 4
        %v1349 = vadd.f32 %v1347, %v1348
        %v1350 = vrot.slane %v1349, 2
        %v1351 = vadd.f32 %v1349, %v1350
        %v1352 = vrot.slane %v1351, 1
        %v1353 = vadd.f32 %v1351, %v1352
        %v1354 = vadd.f32 %v1300, %v1301
        %v1355 = vrot.slane %v1354, 4
        %v1356 = vadd.f32 %v1354, %v1355
        %v1357 = vrot.slane %v1356, 2
        %v1358 = vadd.f32 %v1356, %v1357
        %v1359 = vrot.slane %v1358, 1
        %v1360 = vadd.f32 %v1358, %v1359
        %v1361 = vadd.f32 %v1302, %v1303
        %v1362 = vrot.slane %v1361, 4
        %v1363 = vadd.f32 %v1361, %v1362
        %v1364 = vrot.slane %v1363, 2
        %v1365 = vadd.f32 %v1363, %v1364
        %v1366 = vrot.slane %v1365, 1
        %v1367 = vadd.f32 %v1365, %v1366
        %v1368 = vadd.f32 %v1304, %v1305
        %v1369 = vrot.slane %v1368, 4
        %v1370 = vadd.f32 %v1368, %v1369
        %v1371 = vrot.slane %v1370, 2
        %v1372 = vadd.f32 %v1370, %v1371
        %v1373 = vrot.slane %v1372, 1
        %v1374 = vadd.f32 %v1372, %v1373
        %v1375 = vadd.f32 %v1306, %v1307
        %v1376 = vrot.slane %v1375, 4
        %v1377 = vadd.f32 %v1375, %v1376
        %v1378 = vrot.slane %v1377, 2
        %v1379 = vadd.f32 %v1377, %v1378
        %v1380 = vrot.slane %v1379, 1
        %v1381 = vadd.f32 %v1379, %v1380
        %v1382 = vadd.f32 %v1308, %v1309
        %v1383 = vrot.slane %v1382, 4
        %v1384 = vadd.f32 %v1382, %v1383
        %v1385 = vrot.slane %v1384, 2
        %v1386 = vadd.f32 %v1384, %v1385
        %v1387 = vrot.slane %v1386, 1
        %v1388 = vadd.f32 %v1386, %v1387
        %v1389 = vadd.f32 %v1310, %v1311
        %v1390 = vrot.slane %v1389, 4
        %v1391 = vadd.f32 %v1389, %v1390
        %v1392 = vrot.slane %v1391, 2
        %v1393 = vadd.f32 %v1391, %v1392
        %v1394 = vrot.slane %v1393, 1
        %v1395 = vadd.f32 %v1393, %v1394
        %v1396 = vadd.f32 %v1312, %v1313
        %v1397 = vrot.slane %v1396, 4
        %v1398 = vadd.f32 %v1396, %v1397
        %v1399 = vrot.slane %v1398, 2
        %v1400 = vadd.f32 %v1398, %v1399
        %v1401 = vrot.slane %v1400, 1
        %v1402 = vadd.f32 %v1400, %v1401
        %v1403 = vadd.f32 %v1314, %v1315
        %v1404 = vrot.slane %v1403, 4
        %v1405 = vadd.f32 %v1403, %v1404
        %v1406 = vrot.slane %v1405, 2
        %v1407 = vadd.f32 %v1405, %v1406
        %v1408 = vrot.slane %v1407, 1
        %v1409 = vadd.f32 %v1407, %v1408
        %v1410 = vadd.f32 %v1316, %v1317
        %v1411 = vrot.slane %v1410, 4
        %v1412 = vadd.f32 %v1410, %v1411
        %v1413 = vrot.slane %v1412, 2
        %v1414 = vadd.f32 %v1412, %v1413
        %v1415 = vrot.slane %v1414, 1
        %v1416 = vadd.f32 %v1414, %v1415
        %v1417 = vadd.f32 %v1318, %v1319
        %v1418 = vrot.slane %v1417, 4
        %v1419 = vadd.f32 %v1417, %v1418
        %v1420 = vrot.slane %v1419, 2
        %v1421 = vadd.f32 %v1419, %v1420
        %v1422 = vrot.slane %v1421, 1
        %v1423 = vadd.f32 %v1421, %v1422
        %v1424 = vadd.f32 %v1320, %v1321
        %v1425 = vrot.slane %v1424, 4
        %v1426 = vadd.f32 %v1424, %v1425
        %v1427 = vrot.slane %v1426, 2
        %v1428 = vadd.f32 %v1426, %v1427
        %v1429 = vrot.slane %v1428, 1
        %v1430 = vadd.f32 %v1428, %v1429
        %v1431 = vadd.f32 %v1322, %v1323
        %v1432 = vrot.slane %v1431, 4
        %v1433 = vadd.f32 %v1431, %v1432
        %v1434 = vrot.slane %v1433, 2
        %v1435 = vadd.f32 %v1433, %v1434
        %v1436 = vrot.slane %v1435, 1
        %v1437 = vadd.f32 %v1435, %v1436
        %v1438 = vadd.f32 %v1324, %v1325
        %v1439 = vrot.slane %v1438, 4
        %v1440 = vadd.f32 %v1438, %v1439
        %v1441 = vrot.slane %v1440, 2
        %v1442 = vadd.f32 %v1440, %v1441
        %v1443 = vrot.slane %v1442, 1
        %v1444 = vadd.f32 %v1442, %v1443
        %vm1462 = vcmask 1041409
        %v1463 = vsel %vm1462, %v1339, %v1332
        %vm1464 = vcmask 1042434
        %v1465 = vsel %vm1464, %v1346, %v1463
        %vm1466 = vcmask 1043459
        %v1467 = vsel %vm1466, %v1353, %v1465
        %vm1468 = vcmask 1044484
        %v1469 = vsel %vm1468, %v1360, %v1467
        %vm1470 = vcmask 1045509
        %v1471 = vsel %vm1470, %v1367, %v1469
        %vm1472 = vcmask 1046534
        %v1473 = vsel %vm1472, %v1374, %v1471
        %vm1474 = vcmask 1047559
        %v1475 = vsel %vm1474, %v1381, %v1473
        %v1476 = vsel %vm1462, %v1395, %v1388
        %v1477 = vsel %vm1464, %v1402, %v1476
        %v1478 = vsel %vm1466, %v1409, %v1477
        %v1479 = vsel %vm1468, %v1416, %v1478
        %v1480 = vsel %vm1470, %v1423, %v1479
        %v1481 = vsel %vm1472, %v1430, %v1480
        %v1482 = vsel %vm1474, %v1437, %v1481
        %v1486 = vadd.f32 %v486, %v1475
        %v1487 = vadd.f32 %v487, %v1482
        %v1488 = vadd.f32 %v488, %v1444
        %1489 = vst [vmem:[%s453] sm:$0xff] %v1486
        %1490 = vst [vmem:[%s453 + $0x8] sm:$0xff] %v1487
        %1491 = vst [vmem:[%s453 + $0x10] sm:$0x1] %v1488
      $region44: #{temporal_cross_attention.1} parent=39 // pred_fallthru
        _
      %p1492 = scmp.lt.s32.totalorder %s23, 3
      // Predicated region
      $region45: #{temporal_cross_attention.1} parent=39 // pred_check
        %p1493 = pneg %p1492
      $region46: #{temporal_cross_attention.1} parent=39 // pred_check_branch
        %1495 = sbr.rel (%p1493) target = $region48
      $region47: #{temporal_cross_attention.1} parent=39 // pred_region
        %v1496 = vld [vmem:[%s453] sm:$0xff]
        %v1497 = vld [vmem:[%s453 + $0x8] sm:$0xff]
        %v1498 = vld [vmem:[%s453 + $0x10] sm:$0x1]
        %v1499 = vld [vmem:[%s423] sm:$0xff]
        %v1500 = vld [vmem:[%s423 + $0x8] sm:$0xff]
        %v1501 = vld [vmem:[%s423 + $0x10] sm:$0xff]
        %v1502 = vld [vmem:[%s423 + $0x18] sm:$0xff]
        %v1503 = vld [vmem:[%s423 + $0x20] sm:$0xff]
        %v1504 = vld [vmem:[%s423 + $0x28] sm:$0xff]
        %v1505 = vld [vmem:[%s423 + $0x30] sm:$0xff]
        %v1506 = vld [vmem:[%s423 + $0x38] sm:$0xff]
        %vm1507 = vcmask 261120
        %v1509 = vsel %vm1507, %v467, 0
        %v1512 = vsel %vm1507, %v468, 0
        %v1515 = vsel %vm1507, %v469, 0
        %v1518 = vsel %vm1507, %v1499, 0
        %v1521 = vsel %vm1507, %v1500, 0
        %1523 = vmatprep.subr.mxu0 0.0
        %1524 = vmatpush1.xpose.msra.mxu0 0.0
        %1525 = vmatprep.subr.mxu0 0.0
        %1526 = vmatpush1.xpose.msra.mxu0 0.0
        %1527 = vmatprep.subr.mxu0 0.0
        %1528 = vmatpush1.xpose.msra.mxu0 0.0
        %1529 = vmatprep.subr.mxu0 0.0
        %1530 = vmatpush1.xpose.msra.mxu0 0.0
        %1531 = vmatprep.subr.mxu0 0.0
        %1532 = vmatpush1.xpose.msra.mxu0 0.0
        %1533 = vmatprep.subr.mxu0 0.0
        %1534 = vmatpush1.xpose.msra.mxu0 0.0
        %1535 = vmatprep.subr.mxu0 0.0
        %1536 = vmatpush1.xpose.msra.mxu0 0.0
        %1537 = vmatprep.subr.mxu0 0.0
        %1538 = vmatpush1.xpose.msra.mxu0 0.0
        %1539 = vmatprep.subr.mxu0 0.0
        %1540 = vmatpush1.xpose.msra.mxu0 0.0
        %1541 = vmatprep.subr.mxu0 0.0
        %1542 = vmatpush1.xpose.msra.mxu0 0.0
        %1543 = vmatprep.subr.mxu0 0.0
        %1544 = vmatpush1.xpose.msra.mxu0 0.0
        %1545 = vmatprep.subr.mxu0 0.0
        %1546 = vmatpush1.xpose.msra.mxu0 0.0
        %1547 = vmatprep.subr.mxu0 0.0
        %1548 = vmatpush1.xpose.msra.mxu0 0.0
        %1549 = vmatprep.subr.mxu0 0.0
        %1550 = vmatpush1.xpose.msra.mxu0 0.0
        %1551 = vmatprep.subr.mxu0 0.0
        %1552 = vmatpush1.xpose.msra.mxu0 %v1521
        %1553 = vmatprep.subr.mxu0 0.0
        %1554 = vmatpush1.xpose.msra.mxu0 %v1518
        %1555 = vmatprep.subr.mxu0 0.0
        %1556 = vmatpush2.xpose.msra.mxu0 0.0
        %1557 = vmatprep.subr.mxu0 0.0
        %1558 = vmatpush2.xpose.msra.mxu0 0.0
        %1559 = vmatprep.subr.mxu0 0.0
        %1560 = vmatpush2.xpose.msra.mxu0 0.0
        %1561 = vmatprep.subr.mxu0 0.0
        %1562 = vmatpush2.xpose.msra.mxu0 0.0
        %1563 = vmatprep.subr.mxu0 0.0
        %1564 = vmatpush2.xpose.msra.mxu0 0.0
        %1565 = vmatprep.subr.mxu0 0.0
        %1566 = vmatpush2.xpose.msra.mxu0 0.0
        %1567 = vmatprep.subr.mxu0 0.0
        %1568 = vmatpush2.xpose.msra.mxu0 0.0
        %1569 = vmatprep.subr.mxu0 0.0
        %1570 = vmatpush2.xpose.msra.mxu0 0.0
        %1571 = vmatprep.subr.mxu0 0.0
        %1572 = vmatpush2.xpose.msra.mxu0 0.0
        %1573 = vmatprep.subr.mxu0 0.0
        %1574 = vmatpush2.xpose.msra.mxu0 0.0
        %1575 = vmatprep.subr.mxu0 0.0
        %1576 = vmatpush2.xpose.msra.mxu0 0.0
        %1577 = vmatprep.subr.mxu0 0.0
        %1578 = vmatpush2.xpose.msra.mxu0 0.0
        %1579 = vmatprep.subr.mxu0 0.0
        %1580 = vmatpush2.xpose.msra.mxu0 0.0
        %1581 = vmatprep.subr.mxu0 0.0
        %1582 = vmatpush2.xpose.msra.mxu0 0.0
        %1583 = vmatprep.subr.mxu0 0.0
        %1584 = vmatpush2.xpose.msra.mxu0 0.0
        %1585 = vmatprep.subr.mxu0 0.0
        %1586 = vmatpush2.xpose.msra.mxu0 0.0
        %1587 = vmatprep.mubr.f32.mxu0 0.0
        %1588 = vmatmul.mubr.f32.gmra.mxu0 %v1509
        %v1589 = vpop.f32.mrf.mxu0
        %v1590 = vadd.f32 0.0, %v1589
        %v1591 = vpop.f32.mrf.mxu0
        %1592 = vmatprep.mubr.f32.mxu0 0.0
        %1593 = vmatmul.mubr.f32.gmra.mxu0 %v1512
        %v1594 = vpop.f32.mrf.mxu0
        %v1595 = vadd.f32 0.0, %v1594
        %v1596 = vpop.f32.mrf.mxu0
        %1597 = vmatprep.mubr.f32.mxu0 0.0
        %1598 = vmatmul.mubr.f32.gmra.mxu0 %v1515
        %v1599 = vpop.f32.mrf.mxu0
        %v1600 = vadd.f32 0.0, %v1599
        %v1601 = vpop.f32.mrf.mxu0
        %1602 = vdwg.mxu0
        %v1604 = vsel %vm1507, %v470, 0
        %v1607 = vsel %vm1507, %v471, 0
        %v1610 = vsel %vm1507, %v472, 0
        %v1613 = vsel %vm1507, %v1501, 0
        %v1616 = vsel %vm1507, %v1502, 0
        %1618 = vmatprep.subr.mxu0 0.0
        %1619 = vmatpush1.xpose.msra.mxu0 0.0
        %1620 = vmatprep.subr.mxu0 0.0
        %1621 = vmatpush1.xpose.msra.mxu0 0.0
        %1622 = vmatprep.subr.mxu0 0.0
        %1623 = vmatpush1.xpose.msra.mxu0 0.0
        %1624 = vmatprep.subr.mxu0 0.0
        %1625 = vmatpush1.xpose.msra.mxu0 0.0
        %1626 = vmatprep.subr.mxu0 0.0
        %1627 = vmatpush1.xpose.msra.mxu0 0.0
        %1628 = vmatprep.subr.mxu0 0.0
        %1629 = vmatpush1.xpose.msra.mxu0 0.0
        %1630 = vmatprep.subr.mxu0 0.0
        %1631 = vmatpush1.xpose.msra.mxu0 0.0
        %1632 = vmatprep.subr.mxu0 0.0
        %1633 = vmatpush1.xpose.msra.mxu0 0.0
        %1634 = vmatprep.subr.mxu0 0.0
        %1635 = vmatpush1.xpose.msra.mxu0 0.0
        %1636 = vmatprep.subr.mxu0 0.0
        %1637 = vmatpush1.xpose.msra.mxu0 0.0
        %1638 = vmatprep.subr.mxu0 0.0
        %1639 = vmatpush1.xpose.msra.mxu0 0.0
        %1640 = vmatprep.subr.mxu0 0.0
        %1641 = vmatpush1.xpose.msra.mxu0 0.0
        %1642 = vmatprep.subr.mxu0 0.0
        %1643 = vmatpush1.xpose.msra.mxu0 0.0
        %1644 = vmatprep.subr.mxu0 0.0
        %1645 = vmatpush1.xpose.msra.mxu0 0.0
        %1646 = vmatprep.subr.mxu0 0.0
        %1647 = vmatpush1.xpose.msra.mxu0 %v1616
        %1648 = vmatprep.subr.mxu0 0.0
        %1649 = vmatpush1.xpose.msra.mxu0 %v1613
        %1650 = vmatprep.subr.mxu0 0.0
        %1651 = vmatpush2.xpose.msra.mxu0 0.0
        %1652 = vmatprep.subr.mxu0 0.0
        %1653 = vmatpush2.xpose.msra.mxu0 0.0
        %1654 = vmatprep.subr.mxu0 0.0
        %1655 = vmatpush2.xpose.msra.mxu0 0.0
        %1656 = vmatprep.subr.mxu0 0.0
        %1657 = vmatpush2.xpose.msra.mxu0 0.0
        %1658 = vmatprep.subr.mxu0 0.0
        %1659 = vmatpush2.xpose.msra.mxu0 0.0
        %1660 = vmatprep.subr.mxu0 0.0
        %1661 = vmatpush2.xpose.msra.mxu0 0.0
        %1662 = vmatprep.subr.mxu0 0.0
        %1663 = vmatpush2.xpose.msra.mxu0 0.0
        %1664 = vmatprep.subr.mxu0 0.0
        %1665 = vmatpush2.xpose.msra.mxu0 0.0
        %1666 = vmatprep.subr.mxu0 0.0
        %1667 = vmatpush2.xpose.msra.mxu0 0.0
        %1668 = vmatprep.subr.mxu0 0.0
        %1669 = vmatpush2.xpose.msra.mxu0 0.0
        %1670 = vmatprep.subr.mxu0 0.0
        %1671 = vmatpush2.xpose.msra.mxu0 0.0
        %1672 = vmatprep.subr.mxu0 0.0
        %1673 = vmatpush2.xpose.msra.mxu0 0.0
        %1674 = vmatprep.subr.mxu0 0.0
        %1675 = vmatpush2.xpose.msra.mxu0 0.0
        %1676 = vmatprep.subr.mxu0 0.0
        %1677 = vmatpush2.xpose.msra.mxu0 0.0
        %1678 = vmatprep.subr.mxu0 0.0
        %1679 = vmatpush2.xpose.msra.mxu0 0.0
        %1680 = vmatprep.subr.mxu0 0.0
        %1681 = vmatpush2.xpose.msra.mxu0 0.0
        %1682 = vmatprep.mubr.f32.mxu0 0.0
        %1683 = vmatmul.mubr.f32.gmra.mxu0 %v1604
        %v1684 = vpop.f32.mrf.mxu0
        %v1685 = vadd.f32 0.0, %v1684
        %v1686 = vpop.f32.mrf.mxu0
        %1687 = vmatprep.mubr.f32.mxu0 0.0
        %1688 = vmatmul.mubr.f32.gmra.mxu0 %v1607
        %v1689 = vpop.f32.mrf.mxu0
        %v1690 = vadd.f32 0.0, %v1689
        %v1691 = vpop.f32.mrf.mxu0
        %1692 = vmatprep.mubr.f32.mxu0 0.0
        %1693 = vmatmul.mubr.f32.gmra.mxu0 %v1610
        %v1694 = vpop.f32.mrf.mxu0
        %v1695 = vadd.f32 0.0, %v1694
        %v1696 = vpop.f32.mrf.mxu0
        %1697 = vdwg.mxu0
        %v1699 = vsel %vm1507, %v473, 0
        %v1702 = vsel %vm1507, %v474, 0
        %v1705 = vsel %vm1507, %v475, 0
        %v1708 = vsel %vm1507, %v1503, 0
        %v1711 = vsel %vm1507, %v1504, 0
        %1713 = vmatprep.subr.mxu0 0.0
        %1714 = vmatpush1.xpose.msra.mxu0 0.0
        %1715 = vmatprep.subr.mxu0 0.0
        %1716 = vmatpush1.xpose.msra.mxu0 0.0
        %1717 = vmatprep.subr.mxu0 0.0
        %1718 = vmatpush1.xpose.msra.mxu0 0.0
        %1719 = vmatprep.subr.mxu0 0.0
        %1720 = vmatpush1.xpose.msra.mxu0 0.0
        %1721 = vmatprep.subr.mxu0 0.0
        %1722 = vmatpush1.xpose.msra.mxu0 0.0
        %1723 = vmatprep.subr.mxu0 0.0
        %1724 = vmatpush1.xpose.msra.mxu0 0.0
        %1725 = vmatprep.subr.mxu0 0.0
        %1726 = vmatpush1.xpose.msra.mxu0 0.0
        %1727 = vmatprep.subr.mxu0 0.0
        %1728 = vmatpush1.xpose.msra.mxu0 0.0
        %1729 = vmatprep.subr.mxu0 0.0
        %1730 = vmatpush1.xpose.msra.mxu0 0.0
        %1731 = vmatprep.subr.mxu0 0.0
        %1732 = vmatpush1.xpose.msra.mxu0 0.0
        %1733 = vmatprep.subr.mxu0 0.0
        %1734 = vmatpush1.xpose.msra.mxu0 0.0
        %1735 = vmatprep.subr.mxu0 0.0
        %1736 = vmatpush1.xpose.msra.mxu0 0.0
        %1737 = vmatprep.subr.mxu0 0.0
        %1738 = vmatpush1.xpose.msra.mxu0 0.0
        %1739 = vmatprep.subr.mxu0 0.0
        %1740 = vmatpush1.xpose.msra.mxu0 0.0
        %1741 = vmatprep.subr.mxu0 0.0
        %1742 = vmatpush1.xpose.msra.mxu0 %v1711
        %1743 = vmatprep.subr.mxu0 0.0
        %1744 = vmatpush1.xpose.msra.mxu0 %v1708
        %1745 = vmatprep.subr.mxu0 0.0
        %1746 = vmatpush2.xpose.msra.mxu0 0.0
        %1747 = vmatprep.subr.mxu0 0.0
        %1748 = vmatpush2.xpose.msra.mxu0 0.0
        %1749 = vmatprep.subr.mxu0 0.0
        %1750 = vmatpush2.xpose.msra.mxu0 0.0
        %1751 = vmatprep.subr.mxu0 0.0
        %1752 = vmatpush2.xpose.msra.mxu0 0.0
        %1753 = vmatprep.subr.mxu0 0.0
        %1754 = vmatpush2.xpose.msra.mxu0 0.0
        %1755 = vmatprep.subr.mxu0 0.0
        %1756 = vmatpush2.xpose.msra.mxu0 0.0
        %1757 = vmatprep.subr.mxu0 0.0
        %1758 = vmatpush2.xpose.msra.mxu0 0.0
        %1759 = vmatprep.subr.mxu0 0.0
        %1760 = vmatpush2.xpose.msra.mxu0 0.0
        %1761 = vmatprep.subr.mxu0 0.0
        %1762 = vmatpush2.xpose.msra.mxu0 0.0
        %1763 = vmatprep.subr.mxu0 0.0
        %1764 = vmatpush2.xpose.msra.mxu0 0.0
        %1765 = vmatprep.subr.mxu0 0.0
        %1766 = vmatpush2.xpose.msra.mxu0 0.0
        %1767 = vmatprep.subr.mxu0 0.0
        %1768 = vmatpush2.xpose.msra.mxu0 0.0
        %1769 = vmatprep.subr.mxu0 0.0
        %1770 = vmatpush2.xpose.msra.mxu0 0.0
        %1771 = vmatprep.subr.mxu0 0.0
        %1772 = vmatpush2.xpose.msra.mxu0 0.0
        %1773 = vmatprep.subr.mxu0 0.0
        %1774 = vmatpush2.xpose.msra.mxu0 0.0
        %1775 = vmatprep.subr.mxu0 0.0
        %1776 = vmatpush2.xpose.msra.mxu0 0.0
        %1777 = vmatprep.mubr.f32.mxu0 0.0
        %1778 = vmatmul.mubr.f32.gmra.mxu0 %v1699
        %v1779 = vpop.f32.mrf.mxu0
        %v1780 = vadd.f32 0.0, %v1779
        %v1781 = vpop.f32.mrf.mxu0
        %1782 = vmatprep.mubr.f32.mxu0 0.0
        %1783 = vmatmul.mubr.f32.gmra.mxu0 %v1702
        %v1784 = vpop.f32.mrf.mxu0
        %v1785 = vadd.f32 0.0, %v1784
        %v1786 = vpop.f32.mrf.mxu0
        %1787 = vmatprep.mubr.f32.mxu0 0.0
        %1788 = vmatmul.mubr.f32.gmra.mxu0 %v1705
        %v1789 = vpop.f32.mrf.mxu0
        %v1790 = vadd.f32 0.0, %v1789
        %v1791 = vpop.f32.mrf.mxu0
        %1792 = vdwg.mxu0
        %v1794 = vsel %vm1507, %v476, 0
        %v1797 = vsel %vm1507, %v477, 0
        %v1800 = vsel %vm1507, %v478, 0
        %v1803 = vsel %vm1507, %v1505, 0
        %v1806 = vsel %vm1507, %v1506, 0
        %1808 = vmatprep.subr.mxu0 0.0
        %1809 = vmatpush1.xpose.msra.mxu0 0.0
        %1810 = vmatprep.subr.mxu0 0.0
        %1811 = vmatpush1.xpose.msra.mxu0 0.0
        %1812 = vmatprep.subr.mxu0 0.0
        %1813 = vmatpush1.xpose.msra.mxu0 0.0
        %1814 = vmatprep.subr.mxu0 0.0
        %1815 = vmatpush1.xpose.msra.mxu0 0.0
        %1816 = vmatprep.subr.mxu0 0.0
        %1817 = vmatpush1.xpose.msra.mxu0 0.0
        %1818 = vmatprep.subr.mxu0 0.0
        %1819 = vmatpush1.xpose.msra.mxu0 0.0
        %1820 = vmatprep.subr.mxu0 0.0
        %1821 = vmatpush1.xpose.msra.mxu0 0.0
        %1822 = vmatprep.subr.mxu0 0.0
        %1823 = vmatpush1.xpose.msra.mxu0 0.0
        %1824 = vmatprep.subr.mxu0 0.0
        %1825 = vmatpush1.xpose.msra.mxu0 0.0
        %1826 = vmatprep.subr.mxu0 0.0
        %1827 = vmatpush1.xpose.msra.mxu0 0.0
        %1828 = vmatprep.subr.mxu0 0.0
        %1829 = vmatpush1.xpose.msra.mxu0 0.0
        %1830 = vmatprep.subr.mxu0 0.0
        %1831 = vmatpush1.xpose.msra.mxu0 0.0
        %1832 = vmatprep.subr.mxu0 0.0
        %1833 = vmatpush1.xpose.msra.mxu0 0.0
        %1834 = vmatprep.subr.mxu0 0.0
        %1835 = vmatpush1.xpose.msra.mxu0 0.0
        %1836 = vmatprep.subr.mxu0 0.0
        %1837 = vmatpush1.xpose.msra.mxu0 %v1806
        %1838 = vmatprep.subr.mxu0 0.0
        %1839 = vmatpush1.xpose.msra.mxu0 %v1803
        %1840 = vmatprep.subr.mxu0 0.0
        %1841 = vmatpush2.xpose.msra.mxu0 0.0
        %1842 = vmatprep.subr.mxu0 0.0
        %1843 = vmatpush2.xpose.msra.mxu0 0.0
        %1844 = vmatprep.subr.mxu0 0.0
        %1845 = vmatpush2.xpose.msra.mxu0 0.0
        %1846 = vmatprep.subr.mxu0 0.0
        %1847 = vmatpush2.xpose.msra.mxu0 0.0
        %1848 = vmatprep.subr.mxu0 0.0
        %1849 = vmatpush2.xpose.msra.mxu0 0.0
        %1850 = vmatprep.subr.mxu0 0.0
        %1851 = vmatpush2.xpose.msra.mxu0 0.0
        %1852 = vmatprep.subr.mxu0 0.0
        %1853 = vmatpush2.xpose.msra.mxu0 0.0
        %1854 = vmatprep.subr.mxu0 0.0
        %1855 = vmatpush2.xpose.msra.mxu0 0.0
        %1856 = vmatprep.subr.mxu0 0.0
        %1857 = vmatpush2.xpose.msra.mxu0 0.0
        %1858 = vmatprep.subr.mxu0 0.0
        %1859 = vmatpush2.xpose.msra.mxu0 0.0
        %1860 = vmatprep.subr.mxu0 0.0
        %1861 = vmatpush2.xpose.msra.mxu0 0.0
        %1862 = vmatprep.subr.mxu0 0.0
        %1863 = vmatpush2.xpose.msra.mxu0 0.0
        %1864 = vmatprep.subr.mxu0 0.0
        %1865 = vmatpush2.xpose.msra.mxu0 0.0
        %1866 = vmatprep.subr.mxu0 0.0
        %1867 = vmatpush2.xpose.msra.mxu0 0.0
        %1868 = vmatprep.subr.mxu0 0.0
        %1869 = vmatpush2.xpose.msra.mxu0 0.0
        %1870 = vmatprep.subr.mxu0 0.0
        %1871 = vmatpush2.xpose.msra.mxu0 0.0
        %1872 = vmatprep.mubr.f32.mxu0 0.0
        %1873 = vmatmul.mubr.f32.gmra.mxu0 %v1794
        %v1874 = vpop.f32.mrf.mxu0
        %v1875 = vadd.f32 0.0, %v1874
        %v1876 = vpop.f32.mrf.mxu0
        %1877 = vmatprep.mubr.f32.mxu0 0.0
        %1878 = vmatmul.mubr.f32.gmra.mxu0 %v1797
        %v1879 = vpop.f32.mrf.mxu0
        %v1880 = vadd.f32 0.0, %v1879
        %v1881 = vpop.f32.mrf.mxu0
        %1882 = vmatprep.mubr.f32.mxu0 0.0
        %1883 = vmatmul.mubr.f32.gmra.mxu0 %v1800
        %v1884 = vpop.f32.mrf.mxu0
        %v1885 = vadd.f32 0.0, %v1884
        %v1886 = vpop.f32.mrf.mxu0
        %1887 = vdwg.mxu0
        %vm1888 = vcmask 130048
        %v1889 = vsel %vm1888, %v1590, -inf
        %1890 = vmax.xlane.f32.xlu0 %v1889
        %v1891 = vpop.xlane.xlu0 %1890
        %v1892 = vsel %vm1888, %v1595, -inf
        %1893 = vmax.xlane.f32.xlu0 %v1892
        %v1894 = vpop.xlane.xlu0 %1893
        %vm1895 = vcmask 122880
        %v1896 = vsel %vm1895, %v1600, -inf
        %1897 = vmax.xlane.f32.xlu0 %v1896
        %v1898 = vpop.xlane.xlu0 %1897
        %v1899 = vsel %vm1888, %v1685, -inf
        %1900 = vmax.xlane.f32.xlu0 %v1899
        %v1901 = vpop.xlane.xlu0 %1900
        %v1902 = vsel %vm1888, %v1690, -inf
        %1903 = vmax.xlane.f32.xlu0 %v1902
        %v1904 = vpop.xlane.xlu0 %1903
        %v1905 = vsel %vm1895, %v1695, -inf
        %1906 = vmax.xlane.f32.xlu0 %v1905
        %v1907 = vpop.xlane.xlu0 %1906
        %v1908 = vsel %vm1888, %v1780, -inf
        %1909 = vmax.xlane.f32.xlu0 %v1908
        %v1910 = vpop.xlane.xlu0 %1909
        %v1911 = vsel %vm1888, %v1785, -inf
        %1912 = vmax.xlane.f32.xlu0 %v1911
        %v1913 = vpop.xlane.xlu0 %1912
        %v1914 = vsel %vm1895, %v1790, -inf
        %1915 = vmax.xlane.f32.xlu0 %v1914
        %v1916 = vpop.xlane.xlu0 %1915
        %v1917 = vsel %vm1888, %v1875, -inf
        %1918 = vmax.xlane.f32.xlu0 %v1917
        %v1919 = vpop.xlane.xlu0 %1918
        %v1920 = vsel %vm1888, %v1880, -inf
        %1921 = vmax.xlane.f32.xlu0 %v1920
        %v1922 = vpop.xlane.xlu0 %1921
        %v1923 = vsel %vm1895, %v1885, -inf
        %1924 = vmax.xlane.f32.xlu0 %v1923
        %v1925 = vpop.xlane.xlu0 %1924
        %v1926 = vsub.f32 %v1590, %v1891
        %v1927 = vsub.f32 %v1595, %v1894
        %v1928 = vsub.f32 %v1600, %v1898
        %v1929 = vsub.f32 %v1685, %v1901
        %v1930 = vsub.f32 %v1690, %v1904
        %v1931 = vsub.f32 %v1695, %v1907
        %v1932 = vsub.f32 %v1780, %v1910
        %v1933 = vsub.f32 %v1785, %v1913
        %v1934 = vsub.f32 %v1790, %v1916
        %v1935 = vsub.f32 %v1875, %v1919
        %v1936 = vsub.f32 %v1880, %v1922
        %v1937 = vsub.f32 %v1885, %v1925
        %v1938 = vmul.f32 %v1926, 1.442695
        %v1939 = vpow.pop %v1938
        %v1940 = vmul.f32 %v1927, 1.442695
        %v1941 = vpow.pop %v1940
        %v1942 = vmul.f32 %v1928, 1.442695
        %v1943 = vpow.pop %v1942
        %v1944 = vmul.f32 %v1929, 1.442695
        %v1945 = vpow.pop %v1944
        %v1946 = vmul.f32 %v1930, 1.442695
        %v1947 = vpow.pop %v1946
        %v1948 = vmul.f32 %v1931, 1.442695
        %v1949 = vpow.pop %v1948
        %v1950 = vmul.f32 %v1932, 1.442695
        %v1951 = vpow.pop %v1950
        %v1952 = vmul.f32 %v1933, 1.442695
        %v1953 = vpow.pop %v1952
        %v1954 = vmul.f32 %v1934, 1.442695
        %v1955 = vpow.pop %v1954
        %v1956 = vmul.f32 %v1935, 1.442695
        %v1957 = vpow.pop %v1956
        %v1958 = vmul.f32 %v1936, 1.442695
        %v1959 = vpow.pop %v1958
        %v1960 = vmul.f32 %v1937, 1.442695
        %v1961 = vpow.pop %v1960
        %v1962 = vsel %vm1888, %v1939, 0.0
        %1963 = vadd.xlane.f32.xlu0 %v1962
        %v1964 = vpop.xlane.xlu0 %1963
        %v1965 = vsel %vm1888, %v1941, 0.0
        %1966 = vadd.xlane.f32.xlu0 %v1965
        %v1967 = vpop.xlane.xlu0 %1966
        %v1968 = vsel %vm1895, %v1943, 0.0
        %1969 = vadd.xlane.f32.xlu0 %v1968
        %v1970 = vpop.xlane.xlu0 %1969
        %v1971 = vsel %vm1888, %v1945, 0.0
        %1972 = vadd.xlane.f32.xlu0 %v1971
        %v1973 = vpop.xlane.xlu0 %1972
        %v1974 = vsel %vm1888, %v1947, 0.0
        %1975 = vadd.xlane.f32.xlu0 %v1974
        %v1976 = vpop.xlane.xlu0 %1975
        %v1977 = vsel %vm1895, %v1949, 0.0
        %1978 = vadd.xlane.f32.xlu0 %v1977
        %v1979 = vpop.xlane.xlu0 %1978
        %v1980 = vsel %vm1888, %v1951, 0.0
        %1981 = vadd.xlane.f32.xlu0 %v1980
        %v1982 = vpop.xlane.xlu0 %1981
        %v1983 = vsel %vm1888, %v1953, 0.0
        %1984 = vadd.xlane.f32.xlu0 %v1983
        %v1985 = vpop.xlane.xlu0 %1984
        %v1986 = vsel %vm1895, %v1955, 0.0
        %1987 = vadd.xlane.f32.xlu0 %v1986
        %v1988 = vpop.xlane.xlu0 %1987
        %v1989 = vsel %vm1888, %v1957, 0.0
        %1990 = vadd.xlane.f32.xlu0 %v1989
        %v1991 = vpop.xlane.xlu0 %1990
        %v1992 = vsel %vm1888, %v1959, 0.0
        %1993 = vadd.xlane.f32.xlu0 %v1992
        %v1994 = vpop.xlane.xlu0 %1993
        %v1995 = vsel %vm1895, %v1961, 0.0
        %1996 = vadd.xlane.f32.xlu0 %v1995
        %v1997 = vpop.xlane.xlu0 %1996
        %v1998 = vrcp.pop %v1964
        %v1999 = vrcp.pop %v1967
        %v2000 = vrcp.pop %v1970
        %v2001 = vrcp.pop %v1973
        %v2002 = vrcp.pop %v1976
        %v2003 = vrcp.pop %v1979
        %v2004 = vrcp.pop %v1982
        %v2005 = vrcp.pop %v1985
        %v2006 = vrcp.pop %v1988
        %v2007 = vrcp.pop %v1991
        %v2008 = vrcp.pop %v1994
        %v2009 = vrcp.pop %v1997
        %v2010 = vmul.f32 %v1939, %v1998
        %v2011 = vmul.f32 %v1941, %v1999
        %v2012 = vmul.f32 %v1943, %v2000
        %v2013 = vmul.f32 %v1945, %v2001
        %v2014 = vmul.f32 %v1947, %v2002
        %v2015 = vmul.f32 %v1949, %v2003
        %v2016 = vmul.f32 %v1951, %v2004
        %v2017 = vmul.f32 %v1953, %v2005
        %v2018 = vmul.f32 %v1955, %v2006
        %v2019 = vmul.f32 %v1957, %v2007
        %v2020 = vmul.f32 %v1959, %v2008
        %v2021 = vmul.f32 %v1961, %v2009
        %v2022 = vsel %vm1888, %v2010, 0.0
        %v2023 = vsel %vm1888, %v2013, 0.0
        %v2024 = vadd.f32 %v2022, %v2023
        %v2025 = vsel %vm1888, %v2016, 0.0
        %v2026 = vadd.f32 %v2024, %v2025
        %v2027 = vsel %vm1888, %v2019, 0.0
        %v2028 = vadd.f32 %v2026, %v2027
        %v2029 = vsel %vm1888, %v2011, 0.0
        %v2030 = vsel %vm1888, %v2014, 0.0
        %v2031 = vadd.f32 %v2029, %v2030
        %v2032 = vsel %vm1888, %v2017, 0.0
        %v2033 = vadd.f32 %v2031, %v2032
        %v2034 = vsel %vm1888, %v2020, 0.0
        %v2035 = vadd.f32 %v2033, %v2034
        %v2036 = vsel %vm1895, %v2012, 0.0
        %v2037 = vsel %vm1895, %v2015, 0.0
        %v2038 = vadd.f32 %v2036, %v2037
        %v2039 = vsel %vm1895, %v2018, 0.0
        %v2040 = vadd.f32 %v2038, %v2039
        %v2041 = vsel %vm1895, %v2021, 0.0
        %v2042 = vadd.f32 %v2040, %v2041
        %v2043 = vrcp.pop 4.0
        %v2044 = vmul.f32 %v2028, %v2043
        %v2045 = vmul.f32 %v2035, %v2043
        %v2046 = vmul.f32 %v2042, %v2043
        %v2047 = vlaneseq
        %v2048 = vshrl.u32 %v2047, 7
        %v2049 = vsub.s32 0, %v2048
        %v2050 = vrot.slane %v2044, %v2049
        %2052 = vbcast.lane.b32.xlu0 %v2050, 256
        %v2053 = vpop.permute.xlu0 %2052
        %s2055 = sor.u32 256, 8
        %2056 = vbcast.lane.b32.xlu0 %v2050, %s2055
        %v2057 = vpop.permute.xlu0 %2056
        %v2058 = vlaneseq
        %v2059 = vshrl.u32 %v2058, 7
        %v2060 = vsub.s32 1, %v2059
        %v2061 = vrot.slane %v2044, %v2060
        %2063 = vbcast.lane.b32.xlu0 %v2061, 256
        %v2064 = vpop.permute.xlu0 %2063
        %s2066 = sor.u32 256, 8
        %2067 = vbcast.lane.b32.xlu0 %v2061, %s2066
        %v2068 = vpop.permute.xlu0 %2067
        %v2069 = vlaneseq
        %v2070 = vshrl.u32 %v2069, 7
        %v2071 = vsub.s32 2, %v2070
        %v2072 = vrot.slane %v2044, %v2071
        %2074 = vbcast.lane.b32.xlu0 %v2072, 256
        %v2075 = vpop.permute.xlu0 %2074
        %s2077 = sor.u32 256, 8
        %2078 = vbcast.lane.b32.xlu0 %v2072, %s2077
        %v2079 = vpop.permute.xlu0 %2078
        %v2080 = vlaneseq
        %v2081 = vshrl.u32 %v2080, 7
        %v2082 = vsub.s32 3, %v2081
        %v2083 = vrot.slane %v2044, %v2082
        %2085 = vbcast.lane.b32.xlu0 %v2083, 256
        %v2086 = vpop.permute.xlu0 %2085
        %s2088 = sor.u32 256, 8
        %2089 = vbcast.lane.b32.xlu0 %v2083, %s2088
        %v2090 = vpop.permute.xlu0 %2089
        %v2091 = vlaneseq
        %v2092 = vshrl.u32 %v2091, 7
        %v2093 = vsub.s32 4, %v2092
        %v2094 = vrot.slane %v2044, %v2093
        %2096 = vbcast.lane.b32.xlu0 %v2094, 256
        %v2097 = vpop.permute.xlu0 %2096
        %s2099 = sor.u32 256, 8
        %2100 = vbcast.lane.b32.xlu0 %v2094, %s2099
        %v2101 = vpop.permute.xlu0 %2100
        %v2102 = vlaneseq
        %v2103 = vshrl.u32 %v2102, 7
        %v2104 = vsub.s32 5, %v2103
        %v2105 = vrot.slane %v2044, %v2104
        %2107 = vbcast.lane.b32.xlu0 %v2105, 256
        %v2108 = vpop.permute.xlu0 %2107
        %s2110 = sor.u32 256, 8
        %2111 = vbcast.lane.b32.xlu0 %v2105, %s2110
        %v2112 = vpop.permute.xlu0 %2111
        %v2113 = vlaneseq
        %v2114 = vshrl.u32 %v2113, 7
        %v2115 = vsub.s32 6, %v2114
        %v2116 = vrot.slane %v2044, %v2115
        %2118 = vbcast.lane.b32.xlu0 %v2116, 256
        %v2119 = vpop.permute.xlu0 %2118
        %s2121 = sor.u32 256, 8
        %2122 = vbcast.lane.b32.xlu0 %v2116, %s2121
        %v2123 = vpop.permute.xlu0 %2122
        %v2124 = vlaneseq
        %v2125 = vshrl.u32 %v2124, 7
        %v2126 = vsub.s32 7, %v2125
        %v2127 = vrot.slane %v2044, %v2126
        %2129 = vbcast.lane.b32.xlu0 %v2127, 256
        %v2130 = vpop.permute.xlu0 %2129
        %s2132 = sor.u32 256, 8
        %2133 = vbcast.lane.b32.xlu0 %v2127, %s2132
        %v2134 = vpop.permute.xlu0 %2133
        %v2135 = vlaneseq
        %v2136 = vshrl.u32 %v2135, 7
        %v2137 = vsub.s32 0, %v2136
        %v2138 = vrot.slane %v2045, %v2137
        %2140 = vbcast.lane.b32.xlu0 %v2138, 256
        %v2141 = vpop.permute.xlu0 %2140
        %s2143 = sor.u32 256, 8
        %2144 = vbcast.lane.b32.xlu0 %v2138, %s2143
        %v2145 = vpop.permute.xlu0 %2144
        %v2146 = vlaneseq
        %v2147 = vshrl.u32 %v2146, 7
        %v2148 = vsub.s32 1, %v2147
        %v2149 = vrot.slane %v2045, %v2148
        %2151 = vbcast.lane.b32.xlu0 %v2149, 256
        %v2152 = vpop.permute.xlu0 %2151
        %s2154 = sor.u32 256, 8
        %2155 = vbcast.lane.b32.xlu0 %v2149, %s2154
        %v2156 = vpop.permute.xlu0 %2155
        %v2157 = vlaneseq
        %v2158 = vshrl.u32 %v2157, 7
        %v2159 = vsub.s32 2, %v2158
        %v2160 = vrot.slane %v2045, %v2159
        %2162 = vbcast.lane.b32.xlu0 %v2160, 256
        %v2163 = vpop.permute.xlu0 %2162
        %s2165 = sor.u32 256, 8
        %2166 = vbcast.lane.b32.xlu0 %v2160, %s2165
        %v2167 = vpop.permute.xlu0 %2166
        %v2168 = vlaneseq
        %v2169 = vshrl.u32 %v2168, 7
        %v2170 = vsub.s32 3, %v2169
        %v2171 = vrot.slane %v2045, %v2170
        %2173 = vbcast.lane.b32.xlu0 %v2171, 256
        %v2174 = vpop.permute.xlu0 %2173
        %s2176 = sor.u32 256, 8
        %2177 = vbcast.lane.b32.xlu0 %v2171, %s2176
        %v2178 = vpop.permute.xlu0 %2177
        %v2179 = vlaneseq
        %v2180 = vshrl.u32 %v2179, 7
        %v2181 = vsub.s32 4, %v2180
        %v2182 = vrot.slane %v2045, %v2181
        %2184 = vbcast.lane.b32.xlu0 %v2182, 256
        %v2185 = vpop.permute.xlu0 %2184
        %s2187 = sor.u32 256, 8
        %2188 = vbcast.lane.b32.xlu0 %v2182, %s2187
        %v2189 = vpop.permute.xlu0 %2188
        %v2190 = vlaneseq
        %v2191 = vshrl.u32 %v2190, 7
        %v2192 = vsub.s32 5, %v2191
        %v2193 = vrot.slane %v2045, %v2192
        %2195 = vbcast.lane.b32.xlu0 %v2193, 256
        %v2196 = vpop.permute.xlu0 %2195
        %s2198 = sor.u32 256, 8
        %2199 = vbcast.lane.b32.xlu0 %v2193, %s2198
        %v2200 = vpop.permute.xlu0 %2199
        %v2201 = vlaneseq
        %v2202 = vshrl.u32 %v2201, 7
        %v2203 = vsub.s32 6, %v2202
        %v2204 = vrot.slane %v2045, %v2203
        %2206 = vbcast.lane.b32.xlu0 %v2204, 256
        %v2207 = vpop.permute.xlu0 %2206
        %s2209 = sor.u32 256, 8
        %2210 = vbcast.lane.b32.xlu0 %v2204, %s2209
        %v2211 = vpop.permute.xlu0 %2210
        %v2212 = vlaneseq
        %v2213 = vshrl.u32 %v2212, 7
        %v2214 = vsub.s32 7, %v2213
        %v2215 = vrot.slane %v2045, %v2214
        %2217 = vbcast.lane.b32.xlu0 %v2215, 256
        %v2218 = vpop.permute.xlu0 %2217
        %s2220 = sor.u32 256, 8
        %2221 = vbcast.lane.b32.xlu0 %v2215, %s2220
        %v2222 = vpop.permute.xlu0 %2221
        %v2223 = vlaneseq
        %v2224 = vshrl.u32 %v2223, 7
        %v2225 = vsub.s32 0, %v2224
        %v2226 = vrot.slane %v2046, %v2225
        %2228 = vbcast.lane.b32.xlu0 %v2226, 256
        %v2229 = vpop.permute.xlu0 %2228
        %s2231 = sor.u32 256, 8
        %2232 = vbcast.lane.b32.xlu0 %v2226, %s2231
        %v2233 = vpop.permute.xlu0 %2232
        %v2234 = vld [vmem:[%s439] sm:$0xf]
        %v2235 = vld [vmem:[%s439 + $0x4] sm:$0xf]
        %v2236 = vld [vmem:[%s439 + $0x8] sm:$0xf]
        %v2237 = vld [vmem:[%s439 + $0xc] sm:$0xf]
        %v2238 = vld [vmem:[%s439 + $0x10] sm:$0xf]
        %v2239 = vld [vmem:[%s439 + $0x14] sm:$0xf]
        %v2240 = vld [vmem:[%s439 + $0x18] sm:$0xf]
        %v2241 = vld [vmem:[%s439 + $0x1c] sm:$0xf]
        %v2242 = vld [vmem:[%s439 + $0x20] sm:$0xf]
        %v2243 = vld [vmem:[%s439 + $0x24] sm:$0xf]
        %v2244 = vld [vmem:[%s439 + $0x28] sm:$0xf]
        %v2245 = vld [vmem:[%s439 + $0x2c] sm:$0xf]
        %v2246 = vld [vmem:[%s439 + $0x30] sm:$0xf]
        %v2247 = vld [vmem:[%s439 + $0x34] sm:$0xf]
        %v2248 = vld [vmem:[%s439 + $0x38] sm:$0xf]
        %v2249 = vld [vmem:[%s439 + $0x3c] sm:$0xf]
        %v2250 = vld [vmem:[%s439 + $0x40] sm:$0xf]
        %v2251 = vld [vmem:[%s439 + $0x44] sm:$0xf]
        %v2252 = vld [vmem:[%s439 + $0x48] sm:$0xf]
        %v2253 = vld [vmem:[%s439 + $0x4c] sm:$0xf]
        %v2254 = vld [vmem:[%s439 + $0x50] sm:$0xf]
        %v2255 = vld [vmem:[%s439 + $0x54] sm:$0xf]
        %v2256 = vld [vmem:[%s439 + $0x58] sm:$0xf]
        %v2257 = vld [vmem:[%s439 + $0x5c] sm:$0xf]
        %v2258 = vld [vmem:[%s439 + $0x60] sm:$0xf]
        %v2259 = vld [vmem:[%s439 + $0x64] sm:$0xf]
        %v2260 = vld [vmem:[%s439 + $0x68] sm:$0xf]
        %v2261 = vld [vmem:[%s439 + $0x6c] sm:$0xf]
        %v2262 = vld [vmem:[%s439 + $0x70] sm:$0xf]
        %v2263 = vld [vmem:[%s439 + $0x74] sm:$0xf]
        %v2264 = vld [vmem:[%s439 + $0x78] sm:$0xf]
        %v2265 = vld [vmem:[%s439 + $0x7c] sm:$0xf]
        %v2266 = vld [vmem:[%s439 + $0x80] sm:$0xf]
        %v2267 = vld [vmem:[%s439 + $0x84] sm:$0xf]
        %v2268 = vunpack.c.l.bf16 %v2234
        %v2269 = vunpack.c.l.bf16 %v2235
        %v2270 = vunpack.c.l.bf16 %v2236
        %v2271 = vunpack.c.l.bf16 %v2237
        %v2272 = vunpack.c.l.bf16 %v2238
        %v2273 = vunpack.c.l.bf16 %v2239
        %v2274 = vunpack.c.l.bf16 %v2240
        %v2275 = vunpack.c.l.bf16 %v2241
        %v2276 = vunpack.c.l.bf16 %v2242
        %v2277 = vunpack.c.l.bf16 %v2243
        %v2278 = vunpack.c.l.bf16 %v2244
        %v2279 = vunpack.c.l.bf16 %v2245
        %v2280 = vunpack.c.l.bf16 %v2246
        %v2281 = vunpack.c.l.bf16 %v2247
        %v2282 = vunpack.c.l.bf16 %v2248
        %v2283 = vunpack.c.l.bf16 %v2249
        %v2284 = vunpack.c.l.bf16 %v2250
        %v2285 = vunpack.c.l.bf16 %v2251
        %v2286 = vunpack.c.l.bf16 %v2252
        %v2287 = vunpack.c.l.bf16 %v2253
        %v2288 = vunpack.c.l.bf16 %v2254
        %v2289 = vunpack.c.l.bf16 %v2255
        %v2290 = vunpack.c.l.bf16 %v2256
        %v2291 = vunpack.c.l.bf16 %v2257
        %v2292 = vunpack.c.l.bf16 %v2258
        %v2293 = vunpack.c.l.bf16 %v2259
        %v2294 = vunpack.c.l.bf16 %v2260
        %v2295 = vunpack.c.l.bf16 %v2261
        %v2296 = vunpack.c.l.bf16 %v2262
        %v2297 = vunpack.c.l.bf16 %v2263
        %v2298 = vunpack.c.l.bf16 %v2264
        %v2299 = vunpack.c.l.bf16 %v2265
        %v2300 = vunpack.c.l.bf16 %v2266
        %v2301 = vunpack.c.l.bf16 %v2267
        %v2302 = vmul.f32 %v2053, %v2268
        %v2303 = vmul.f32 %v2057, %v2269
        %v2304 = vmul.f32 %v2064, %v2270
        %v2305 = vmul.f32 %v2068, %v2271
        %v2306 = vmul.f32 %v2075, %v2272
        %v2307 = vmul.f32 %v2079, %v2273
        %v2308 = vmul.f32 %v2086, %v2274
        %v2309 = vmul.f32 %v2090, %v2275
        %v2310 = vmul.f32 %v2097, %v2276
        %v2311 = vmul.f32 %v2101, %v2277
        %v2312 = vmul.f32 %v2108, %v2278
        %v2313 = vmul.f32 %v2112, %v2279
        %v2314 = vmul.f32 %v2119, %v2280
        %v2315 = vmul.f32 %v2123, %v2281
        %v2316 = vmul.f32 %v2130, %v2282
        %v2317 = vmul.f32 %v2134, %v2283
        %v2318 = vmul.f32 %v2141, %v2284
        %v2319 = vmul.f32 %v2145, %v2285
        %v2320 = vmul.f32 %v2152, %v2286
        %v2321 = vmul.f32 %v2156, %v2287
        %v2322 = vmul.f32 %v2163, %v2288
        %v2323 = vmul.f32 %v2167, %v2289
        %v2324 = vmul.f32 %v2174, %v2290
        %v2325 = vmul.f32 %v2178, %v2291
        %v2326 = vmul.f32 %v2185, %v2292
        %v2327 = vmul.f32 %v2189, %v2293
        %v2328 = vmul.f32 %v2196, %v2294
        %v2329 = vmul.f32 %v2200, %v2295
        %v2330 = vmul.f32 %v2207, %v2296
        %v2331 = vmul.f32 %v2211, %v2297
        %v2332 = vmul.f32 %v2218, %v2298
        %v2333 = vmul.f32 %v2222, %v2299
        %v2334 = vmul.f32 %v2229, %v2300
        %v2335 = vmul.f32 %v2233, %v2301
        %v2336 = vadd.f32 %v2302, %v2303
        %v2337 = vrot.slane %v2336, 4
        %v2338 = vadd.f32 %v2336, %v2337
        %v2339 = vrot.slane %v2338, 2
        %v2340 = vadd.f32 %v2338, %v2339
        %v2341 = vrot.slane %v2340, 1
        %v2342 = vadd.f32 %v2340, %v2341
        %v2343 = vadd.f32 %v2304, %v2305
        %v2344 = vrot.slane %v2343, 4
        %v2345 = vadd.f32 %v2343, %v2344
        %v2346 = vrot.slane %v2345, 2
        %v2347 = vadd.f32 %v2345, %v2346
        %v2348 = vrot.slane %v2347, 1
        %v2349 = vadd.f32 %v2347, %v2348
        %v2350 = vadd.f32 %v2306, %v2307
        %v2351 = vrot.slane %v2350, 4
        %v2352 = vadd.f32 %v2350, %v2351
        %v2353 = vrot.slane %v2352, 2
        %v2354 = vadd.f32 %v2352, %v2353
        %v2355 = vrot.slane %v2354, 1
        %v2356 = vadd.f32 %v2354, %v2355
        %v2357 = vadd.f32 %v2308, %v2309
        %v2358 = vrot.slane %v2357, 4
        %v2359 = vadd.f32 %v2357, %v2358
        %v2360 = vrot.slane %v2359, 2
        %v2361 = vadd.f32 %v2359, %v2360
        %v2362 = vrot.slane %v2361, 1
        %v2363 = vadd.f32 %v2361, %v2362
        %v2364 = vadd.f32 %v2310, %v2311
        %v2365 = vrot.slane %v2364, 4
        %v2366 = vadd.f32 %v2364, %v2365
        %v2367 = vrot.slane %v2366, 2
        %v2368 = vadd.f32 %v2366, %v2367
        %v2369 = vrot.slane %v2368, 1
        %v2370 = vadd.f32 %v2368, %v2369
        %v2371 = vadd.f32 %v2312, %v2313
        %v2372 = vrot.slane %v2371, 4
        %v2373 = vadd.f32 %v2371, %v2372
        %v2374 = vrot.slane %v2373, 2
        %v2375 = vadd.f32 %v2373, %v2374
        %v2376 = vrot.slane %v2375, 1
        %v2377 = vadd.f32 %v2375, %v2376
        %v2378 = vadd.f32 %v2314, %v2315
        %v2379 = vrot.slane %v2378, 4
        %v2380 = vadd.f32 %v2378, %v2379
        %v2381 = vrot.slane %v2380, 2
        %v2382 = vadd.f32 %v2380, %v2381
        %v2383 = vrot.slane %v2382, 1
        %v2384 = vadd.f32 %v2382, %v2383
        %v2385 = vadd.f32 %v2316, %v2317
        %v2386 = vrot.slane %v2385, 4
        %v2387 = vadd.f32 %v2385, %v2386
        %v2388 = vrot.slane %v2387, 2
        %v2389 = vadd.f32 %v2387, %v2388
        %v2390 = vrot.slane %v2389, 1
        %v2391 = vadd.f32 %v2389, %v2390
        %v2392 = vadd.f32 %v2318, %v2319
        %v2393 = vrot.slane %v2392, 4
        %v2394 = vadd.f32 %v2392, %v2393
        %v2395 = vrot.slane %v2394, 2
        %v2396 = vadd.f32 %v2394, %v2395
        %v2397 = vrot.slane %v2396, 1
        %v2398 = vadd.f32 %v2396, %v2397
        %v2399 = vadd.f32 %v2320, %v2321
        %v2400 = vrot.slane %v2399, 4
        %v2401 = vadd.f32 %v2399, %v2400
        %v2402 = vrot.slane %v2401, 2
        %v2403 = vadd.f32 %v2401, %v2402
        %v2404 = vrot.slane %v2403, 1
        %v2405 = vadd.f32 %v2403, %v2404
        %v2406 = vadd.f32 %v2322, %v2323
        %v2407 = vrot.slane %v2406, 4
        %v2408 = vadd.f32 %v2406, %v2407
        %v2409 = vrot.slane %v2408, 2
        %v2410 = vadd.f32 %v2408, %v2409
        %v2411 = vrot.slane %v2410, 1
        %v2412 = vadd.f32 %v2410, %v2411
        %v2413 = vadd.f32 %v2324, %v2325
        %v2414 = vrot.slane %v2413, 4
        %v2415 = vadd.f32 %v2413, %v2414
        %v2416 = vrot.slane %v2415, 2
        %v2417 = vadd.f32 %v2415, %v2416
        %v2418 = vrot.slane %v2417, 1
        %v2419 = vadd.f32 %v2417, %v2418
        %v2420 = vadd.f32 %v2326, %v2327
        %v2421 = vrot.slane %v2420, 4
        %v2422 = vadd.f32 %v2420, %v2421
        %v2423 = vrot.slane %v2422, 2
        %v2424 = vadd.f32 %v2422, %v2423
        %v2425 = vrot.slane %v2424, 1
        %v2426 = vadd.f32 %v2424, %v2425
        %v2427 = vadd.f32 %v2328, %v2329
        %v2428 = vrot.slane %v2427, 4
        %v2429 = vadd.f32 %v2427, %v2428
        %v2430 = vrot.slane %v2429, 2
        %v2431 = vadd.f32 %v2429, %v2430
        %v2432 = vrot.slane %v2431, 1
        %v2433 = vadd.f32 %v2431, %v2432
        %v2434 = vadd.f32 %v2330, %v2331
        %v2435 = vrot.slane %v2434, 4
        %v2436 = vadd.f32 %v2434, %v2435
        %v2437 = vrot.slane %v2436, 2
        %v2438 = vadd.f32 %v2436, %v2437
        %v2439 = vrot.slane %v2438, 1
        %v2440 = vadd.f32 %v2438, %v2439
        %v2441 = vadd.f32 %v2332, %v2333
        %v2442 = vrot.slane %v2441, 4
        %v2443 = vadd.f32 %v2441, %v2442
        %v2444 = vrot.slane %v2443, 2
        %v2445 = vadd.f32 %v2443, %v2444
        %v2446 = vrot.slane %v2445, 1
        %v2447 = vadd.f32 %v2445, %v2446
        %v2448 = vadd.f32 %v2334, %v2335
        %v2449 = vrot.slane %v2448, 4
        %v2450 = vadd.f32 %v2448, %v2449
        %v2451 = vrot.slane %v2450, 2
        %v2452 = vadd.f32 %v2450, %v2451
        %v2453 = vrot.slane %v2452, 1
        %v2454 = vadd.f32 %v2452, %v2453
        %vm2472 = vcmask 1041409
        %v2473 = vsel %vm2472, %v2349, %v2342
        %vm2474 = vcmask 1042434
        %v2475 = vsel %vm2474, %v2356, %v2473
        %vm2476 = vcmask 1043459
        %v2477 = vsel %vm2476, %v2363, %v2475
        %vm2478 = vcmask 1044484
        %v2479 = vsel %vm2478, %v2370, %v2477
        %vm2480 = vcmask 1045509
        %v2481 = vsel %vm2480, %v2377, %v2479
        %vm2482 = vcmask 1046534
        %v2483 = vsel %vm2482, %v2384, %v2481
        %vm2484 = vcmask 1047559
        %v2485 = vsel %vm2484, %v2391, %v2483
        %v2486 = vsel %vm2472, %v2405, %v2398
        %v2487 = vsel %vm2474, %v2412, %v2486
        %v2488 = vsel %vm2476, %v2419, %v2487
        %v2489 = vsel %vm2478, %v2426, %v2488
        %v2490 = vsel %vm2480, %v2433, %v2489
        %v2491 = vsel %vm2482, %v2440, %v2490
        %v2492 = vsel %vm2484, %v2447, %v2491
        %v2496 = vadd.f32 %v1496, %v2485
        %v2497 = vadd.f32 %v1497, %v2492
        %v2498 = vadd.f32 %v1498, %v2454
        %2499 = vst [vmem:[%s453] sm:$0xff] %v2496
        %2500 = vst [vmem:[%s453 + $0x8] sm:$0xff] %v2497
        %2501 = vst [vmem:[%s453 + $0x10] sm:$0x1] %v2498
      $region48: #{temporal_cross_attention.1} parent=39 // pred_fallthru
        _
      %s2502 = smul.u32 3, %s21
      %p2503 = scmp.lt.s32.totalorder %s22, 1
      %s2504 = scalar_select %p2503, %s22, 1
      %p2505 = scmp.lt.s32.totalorder %s23, 3
      %s2506 = scalar_select %p2505, %s23, 3
      %p2507 = scmp.lt.s32.totalorder %s2502, 2
      %s2508 = scalar_select %p2507, %s2502, 2
      %s2509 = smul.addr %s2506, 3
      %s2510 = sadd.s32 %s2508, %s2509
      %s2511 = smul.addr %s2504, 12
      %s2512 = sadd.s32 %s2510, %s2511
      %s2513 = smul.addr %s2512, 8
      %s2514 = scalar_lea.vmem %s5, %s2513
      // Predicated region
      $region49: #{temporal_cross_attention.1} parent=39 // pred_check
        %p2515 = pneg %p207
      $region50: #{temporal_cross_attention.1} parent=39 // pred_check_branch
        %2517 = sbr.rel (%p2515) target = $region52
      $region51: #{temporal_cross_attention.1} parent=39 // pred_region
        %s2518 = smul.u32 3, %s21
      $region52: #{temporal_cross_attention.1} parent=39 // pred_fallthru
        _
    $region40: #{temporal_cross_attention.1} parent=5 // pred_fallthru
      _
    %p2519 = scmp.le.s32.totalorder 2, %s11
    // Predicated region
    $region53: #{temporal_cross_attention.1} parent=5 // pred_check
      %p2520 = pneg %p2519
    $region54: #{temporal_cross_attention.1} parent=5 // pred_check_branch
      %2522 = sbr.rel (%p2520) target = $region56
    $region55: #{temporal_cross_attention.1} parent=5 // pred_region
      %s2523 = ssub.s32 %s11, 2
      // Predicated region
      $region57: #{temporal_cross_attention.1} parent=55 // pred_check
        %p2524 = pneg %p213
      $region58: #{temporal_cross_attention.1} parent=55 // pred_check_branch
        %2526 = sbr.rel (%p2524) target = $region60
      $region59: #{temporal_cross_attention.1} parent=55 // pred_region
        %s2527 = smul.u32 3, %s24
        %p2528 = scmp.lt.s32.totalorder %s25, 1
        %s2529 = scalar_select %p2528, %s25, 1
        %p2530 = scmp.lt.s32.totalorder %s26, 3
        %s2531 = scalar_select %p2530, %s26, 3
        %p2532 = scmp.lt.s32.totalorder %s2527, 2
        %s2533 = scalar_select %p2532, %s2527, 2
        %s2534 = smul.addr %s2531, 3
        %s2535 = sadd.s32 %s2533, %s2534
        %s2536 = smul.addr %s2529, 12
        %s2537 = sadd.s32 %s2535, %s2536
        %s2538 = smul.addr %s2537, 8
        %s2539 = scalar_lea.vmem %s5, %s2538
      $region60: #{temporal_cross_attention.1} parent=55 // pred_fallthru
        _
    $region56: #{temporal_cross_attention.1} parent=5 // pred_fallthru
      _
  $region6: #{temporal_cross_attention.1} parent=0 // loop_footer
    %s15 = sadd.s32 1, %s11
  $region7: #{temporal_cross_attention.1} parent=0 // loop_footer_branch
    %10 = sbr.rel target = $region3
  $region8: #{temporal_cross_attention.1} parent=0 // loop_exit
    _

</llo_original>
